<compile_context>
chip_gen: v7x
topology: tpu7x:2x2x1
jax: 0.10.0
libtpu: 0.0.40
codegen_flags: <defaults>
</compile_context>

<pallas_src>
import math
import functools

import jax
import jax.numpy as jnp
from jax.experimental import pallas as pl
from jax.experimental.pallas import tpu as pltpu


# ----------------------------------------------------------------------------
# Kernel helpers
# ----------------------------------------------------------------------------
def _layer_norm(z, w, b, eps):
    # z: (N, D) f32 ; w, b: (1, D) f32
    mu = jnp.mean(z, axis=-1, keepdims=True)
    var = jnp.mean((z - mu) ** 2, axis=-1, keepdims=True)
    return (z - mu) * jax.lax.rsqrt(var + eps) * w + b


# ----------------------------------------------------------------------------
# Kernel: whole decoder stack.  Grid = (batch_group, layer); the output block
# is the resident activation buffer across the (serial) layer axis.
# ----------------------------------------------------------------------------
def decoder_stack_kernel(
    x_ref,            # (Bb, S, D)     input activations (read at layer 0)
    *rest,
    heads: int,
    eps: float,
    use_mask: bool,
):
    if use_mask:
        bias_ref = rest[0]            # (S, S) bf16 additive bias (0 / -1e30)
        rest = rest[1:]
    (wqkv_ref,        # (1, D, 3D)     bf16   Wq|Wk|Wv^T column-concatenated
     wo_ref,          # (1, D, D)      bf16   Wo^T
     ln_ref,          # (1, 4, D)      f32    [ln1_w; ln1_b; ln2_w; ln2_b]
     w1_ref,          # (1, D, d_ff)   bf16   FFN W1^T
     w2_ref,          # (1, d_ff, D)   bf16   FFN W2^T
     out_ref,         # (Bb, S, D)     resident activation / final output
     ) = rest

    layer = pl.program_id(1)

    # Seed the resident activation window from x at the first layer.  Output
    # windows are never prefetched from HBM, so even with x aliased to the
    # output this one VMEM copy per batch group is required.
    @pl.when(layer == 0)
    def _():
        out_ref[...] = x_ref[...]

    a3 = out_ref[...].astype(jnp.float32)          # (Bb, S, D)
    Bb, S, D = a3.shape
    dk = D // heads
    scale = 1.0 / math.sqrt(dk)

    a2 = a3.reshape(Bb * S, D)                     # free when S % 8 == 0

    # ---- fused Q|K|V projection: one MXU matmul, bf16 in / f32 acc --------
    qkv = jnp.dot(a2.astype(jnp.bfloat16), wqkv_ref[0],
                  preferred_element_type=jnp.float32)          # (Bb*S, 3D)

    if use_mask:
        bias = bias_ref[...].astype(jnp.float32)[None, :, :]   # (1, S, S)

    # ---- attention -----------------------------------------------------------
    # TODO(synk): for large S, replace the full (S, S) score materialization
    # with flash-style (tq, tk) online-softmax tiling, and choose D/heads so
    # dk is a multiple of 128 (lane-aligned slices, full MXU fill).
    head_outs = []
    for h in range(heads):
        qh = (qkv[:, h * dk:(h + 1) * dk] * scale
              ).astype(jnp.bfloat16).reshape(Bb, S, dk)
        kh = qkv[:, D + h * dk:D + (h + 1) * dk
                 ].astype(jnp.bfloat16).reshape(Bb, S, dk)
        vh = qkv[:, 2 * D + h * dk:2 * D + (h + 1) * dk
                 ].astype(jnp.bfloat16).reshape(Bb, S, dk)
        # Batched QK^T contracting the last dims (no explicit XLU transpose).
        s = jnp.einsum("bqd,bkd->bqk", qh, kh,
                       preferred_element_type=jnp.float32)     # (Bb, S, S)
        if use_mask:
            s = s + bias                                       # finite bias
        s = s - jnp.max(s, axis=-1, keepdims=True)
        p = jnp.exp(s)
        inv = pl.reciprocal(jnp.sum(p, axis=-1, keepdims=True), approx=True)
        p = p * inv
        head_outs.append(jnp.einsum("bqk,bkd->bqd", p.astype(jnp.bfloat16),
                                    vh, preferred_element_type=jnp.float32))
    concat = jnp.concatenate(head_outs, axis=-1).reshape(Bb * S, D)

    a1 = jnp.dot(concat.astype(jnp.bfloat16), wo_ref[0],
                 preferred_element_type=jnp.float32)           # (Bb*S, D)

    # ---- residual + LN, FFN, residual + LN --------------------------------
    ln = ln_ref[0]                                             # (4, D)
    h1 = _layer_norm(a2 + a1, ln[0:1, :], ln[1:2, :], eps)

    f = jnp.dot(h1.astype(jnp.bfloat16), w1_ref[0],
                preferred_element_type=jnp.float32)
    f = jnp.maximum(f, 0.0)
    f2 = jnp.dot(f.astype(jnp.bfloat16), w2_ref[0],
                 preferred_element_type=jnp.float32)

    out = _layer_norm(h1 + f2, ln[2:3, :], ln[3:4, :], eps)    # dropout = id
    out_ref[...] = out.reshape(Bb, S, D).astype(out_ref.dtype)


# ----------------------------------------------------------------------------
# Wrapper: single pallas_call over (batch groups, layers).
# ----------------------------------------------------------------------------
def decoder_forward(x, params, self_attn_mask=None, *, heads, eps=1e-5):
    """Decoder.forward (eval mode).  Returns (a, attentions, values) with
    empty activation lists (save_activations=False path of the PyTorch
    module)."""
    B, S, D = x.shape
    assert D % heads == 0, "d_model must be divisible by heads"
    L = params["wqkv"].shape[0]
    d_ff = params["w1"].shape[-1]
    use_mask = self_attn_mask is not None

    # --- per-generation VMEM cap (don't request full physical VMEM on v7x) --
    try:
        phys_vmem = int(pltpu.get_tpu_info().vmem_capacity_bytes)
    except Exception:  # pragma: no cover - conservative fallback
        phys_vmem = 64 * 1024 * 1024
    cap = min(int(phys_vmem * 0.8), 100 * 1024 * 1024)

    x_bytes = x.dtype.itemsize
    mask_bytes = S * S * 2 if use_mask else 0     # bf16 additive bias

    def vmem_est(bb):
        # double-buffered weight streams (bf16) + merged LN (f32)
        w_layer = (D * 3 * D + D * D + 2 * D * d_ff) * 2 + 4 * D * 4
        act = bb * S * D
        est = 2 * w_layer
        est += 2 * act * x_bytes              # x input (double-buffered)
        est += 2 * act * 4                    # resident output window
        est += 2 * mask_bytes                 # bf16 mask bias
        # live f32 temporaries (qkv, one head's scores/probs, head outputs,
        # residual/LN tensors, FFN hidden); 1.5x fudge for transient bf16.
        est += int(1.5 * 4 * bb * S * (3 * D + 2 * S + 6 * D + d_ff))
        return est

    # --- batch blocking: largest Bb dividing B that fits the VMEM budget ----
    bb = 1
    for cand in sorted((d for d in range(1, B + 1) if B % d == 0), reverse=True):
        if vmem_est(cand) <= int(0.75 * cap):
            bb = cand
            break
    nb = B // bb
    vmem_limit = int(min(max(vmem_est(bb) + (8 << 20), 32 << 20), cap))

    kernel = functools.partial(decoder_stack_kernel,
                               heads=heads, eps=eps, use_mask=use_mask)

    def per_layer(shape):
        return pl.BlockSpec((1,) + shape,
                            lambda b, l: (l,) + (0,) * len(shape))

    in_specs = [pl.BlockSpec((bb, S, D), lambda b, l: (b, 0, 0))]   # x
    args = [x]
    if use_mask:
        m2 = jnp.asarray(self_attn_mask)
        m2 = m2.reshape(m2.shape[-2], m2.shape[-1])
        bias = jnp.where(m2 == 0, -1e30, 0.0).astype(jnp.bfloat16)
        in_specs.append(pl.BlockSpec((S, S), lambda b, l: (0, 0)))
        args.append(bias)

    in_specs += [
        per_layer((D, 3 * D)),    # Wq|Wk|Wv^T
        per_layer((D, D)),        # Wo^T
        per_layer((4, D)),        # merged ln1/ln2 (weight, bias)
        per_layer((D, d_ff)),     # FFN W1^T
        per_layer((d_ff, D)),     # FFN W2^T
    ]
    args += [params["wqkv"], params["wo"], params["ln"],
             params["w1"], params["w2"]]

    # --- advisory cost estimate ---------------------------------------------
    step_flops = (2 * bb * S * D * 3 * D          # QKV projection
                  + 4 * bb * S * S * D            # QK^T + PV over all heads
                  + 2 * bb * S * D * D            # Wo
                  + 4 * bb * S * D * d_ff)        # FFN
    w_layer_bytes = (D * 3 * D + D * D + 2 * D * d_ff) * 2 + 4 * D * 4
    cost = pl.CostEstimate(
        flops=int(nb * L * step_flops),
        transcendentals=int(nb * L * (heads * bb * S * S
                                      + heads * bb * S + 2 * bb * S)),
        bytes_accessed=int(2 * B * S * D * x_bytes
                           + nb * L * w_layer_bytes + mask_bytes),
    )

    # TODO(synk): when nb < 2 on v7x the second TensorCore is idle; add a
    # parallel grid axis over query tiles (flash tiling) to use both TCs.
    out = pl.pallas_call(
        kernel,
        out_shape=jax.ShapeDtypeStruct((B, S, D), x.dtype),
        grid_spec=pltpu.PrefetchScalarGridSpec(
            num_scalar_prefetch=0,
            grid=(nb, L),                     # layer (serial) axis innermost
            in_specs=in_specs,
            out_specs=pl.BlockSpec((bb, S, D), lambda b, l: (b, 0, 0)),
        ),
        input_output_aliases={0: 0},          # x buffer reused as the output
        compiler_params=pltpu.CompilerParams(
            dimension_semantics=("parallel", "arbitrary"),
            vmem_limit_bytes=vmem_limit,
        ),
        cost_estimate=cost,
    )(*args)
    return out, [], []


# ----------------------------------------------------------------------------
# Deterministic parameter construction (synthetic weights, stacked per layer)
# ----------------------------------------------------------------------------
def init_decoder_params(key, *, d_model, heads, num_blocks, multiplier=4):
    d_ff = multiplier * d_model
    L = num_blocks
    scale = 0.05
    ks = jax.random.split(key, 6)
    wq = scale * jax.random.normal(ks[0], (L, d_model, d_model), jnp.float32)
    wk = scale * jax.random.normal(ks[1], (L, d_model, d_model), jnp.float32)
    wv = scale * jax.random.normal(ks[2], (L, d_model, d_model), jnp.float32)
    wo = scale * jax.random.normal(ks[3], (L, d_model, d_model), jnp.float32)
    w1 = scale * jax.random.normal(ks[4], (L, d_model, d_ff), jnp.float32)
    w2 = scale * jax.random.normal(ks[5], (L, d_ff, d_model), jnp.float32)
    # merged LayerNorm params: rows = [ln1_w, ln1_b, ln2_w, ln2_b]
    ln = jnp.stack([jnp.ones((L, d_model)), jnp.zeros((L, d_model)),
                    jnp.ones((L, d_model)), jnp.zeros((L, d_model))],
                   axis=1).astype(jnp.float32)            # (L, 4, D)
    return {
        # weights stored transposed (in, out) so the kernel does x @ W;
        # bf16 storage halves weight DMA / VMEM footprint.
        "wqkv": jnp.concatenate([wq, wk, wv], axis=-1).astype(jnp.bfloat16),
        "wo": wo.astype(jnp.bfloat16),
        "w1": w1.astype(jnp.bfloat16),
        "w2": w2.astype(jnp.bfloat16),
        "ln": ln,
    }


# ----------------------------------------------------------------------------
# Pure-JAX reference (same bf16-stored weights, f32 math) for a sanity check.
# ----------------------------------------------------------------------------
def decoder_reference(x, params, self_attn_mask=None, *, heads, eps=1e-5):
    B, S, D = x.shape
    L = params["wqkv"].shape[0]
    dk = D // heads
    a = x.astype(jnp.float32)
    bias = None
    if self_attn_mask is not None:
        bias = jnp.where(self_attn_mask == 0, -1e30, 0.0).astype(jnp.float32)

    def ln(z, w, b):
        mu = z.mean(-1, keepdims=True)
        var = ((z - mu) ** 2).mean(-1, keepdims=True)
        return (z - mu) * jax.lax.rsqrt(var + eps) * w + b

    for l in range(L):
        wqkv = params["wqkv"][l].astype(jnp.float32)
        wo = params["wo"][l].astype(jnp.float32)
        w1 = params["w1"][l].astype(jnp.float32)
        w2 = params["w2"][l].astype(jnp.float32)
        lnp = params["ln"][l]
        qkv = a @ wqkv
        q, k, v = qkv[..., :D], qkv[..., D:2 * D], qkv[..., 2 * D:]
        outs = []
        for h in range(heads):
            qh = q[..., h * dk:(h + 1) * dk]
            kh = k[..., h * dk:(h + 1) * dk]
            vh = v[..., h * dk:(h + 1) * dk]
            s = jnp.einsum("bqd,bkd->bqk", qh, kh) / math.sqrt(dk)
            if bias is not None:
                s = s + bias
            p = jax.nn.softmax(s, axis=-1)
            outs.append(jnp.einsum("bqk,bkd->bqd", p, vh))
        a1 = jnp.concatenate(outs, axis=-1) @ wo
        h1 = ln(a + a1, lnp[0], lnp[1])
        f2 = jnp.maximum(h1 @ w1, 0.0) @ w2
        a = ln(h1 + f2, lnp[2], lnp[3])
    return a


if __name__ == "__main__":
    # Small shapes consistent with the module: batch=2, seq=8, d_model=32,
    # heads=4 (d_key=8), num_blocks=2, dropout inactive (eval).
    # NOTE: real configs should pad D (and d_key) to multiples of 128 for
    # lane-dense vregs / full MXU fill; D=32 is only for demonstration.
    B, S, D, H, NUM_BLOCKS = 2, 8, 32, 4, 2

    key = jax.random.PRNGKey(0)
    kx, kp = jax.random.split(key)
    x = jax.random.normal(kx, (B, S, D), jnp.float32)
    params = init_decoder_params(kp, d_model=D, heads=H, num_blocks=NUM_BLOCKS)

    # TODO(synk): weight_noise / dropout training-mode stochasticity is not
    # modeled (inference-mode forward only), matching module.eval().

    # --- no-mask path -------------------------------------------------------
    out, attns, vals = decoder_forward(x, params, self_attn_mask=None, heads=H)
    out = jax.block_until_ready(out)
    ref = decoder_reference(x, params, self_attn_mask=None, heads=H)
    err = float(jnp.max(jnp.abs(out - ref)))
    assert out.shape == (B, S, D)
    assert attns == [] and vals == []
    assert not bool(jnp.any(jnp.isnan(out)))
    assert err < 1e-1, f"max abs error (no mask) vs reference: {err}"

    # --- causal-mask path (masked_fill(mask == 0, -inf) semantics) ----------
    mask = jnp.tril(jnp.ones((S, S), jnp.int32))
    out_m, _, _ = decoder_forward(x, params, self_attn_mask=mask, heads=H)
    out_m = jax.block_until_ready(out_m)
    ref_m = decoder_reference(x, params, self_attn_mask=mask, heads=H)
    err_m = float(jnp.max(jnp.abs(out_m - ref_m)))
    assert not bool(jnp.any(jnp.isnan(out_m)))
    assert err_m < 1e-1, f"max abs error (masked) vs reference: {err_m}"

    print("KERNEL_OK")
</pallas_src>

<mosaic_0001>
module attributes {stable_mosaic.version = 11 : i64} {
  func.func @decoder_stack_kernel(%arg0: i32, %arg1: i32, %arg2: memref<2x8x32xf32, #tpu.memory_space<vmem>>, %arg3: memref<1x32x96xbf16, #tpu.memory_space<vmem>>, %arg4: memref<1x32x32xbf16, #tpu.memory_space<vmem>>, %arg5: memref<1x4x32xf32, #tpu.memory_space<vmem>>, %arg6: memref<1x32x128xbf16, #tpu.memory_space<vmem>>, %arg7: memref<1x128x32xbf16, #tpu.memory_space<vmem>>, %arg8: memref<2x8x32xf32, #tpu.memory_space<vmem>>) attributes {dimension_semantics = [#tpu.dimension_semantics<parallel>, #tpu.dimension_semantics<arbitrary>], iteration_bounds = array<i64: 1, 2>, scalar_prefetch = 0 : i64, scratch_operands = 0 : i64, tpu.core_type = #tpu.core_type<tc>, window_params = [{transform_indices = @transform_0, window_bounds = array<i64: 2, 8, 32>}, {transform_indices = @transform_1, window_bounds = array<i64: 1, 32, 96>}, {transform_indices = @transform_2, window_bounds = array<i64: 1, 32, 32>}, {transform_indices = @transform_3, window_bounds = array<i64: 1, 4, 32>}, {transform_indices = @transform_4, window_bounds = array<i64: 1, 32, 128>}, {transform_indices = @transform_5, window_bounds = array<i64: 1, 128, 32>}, {transform_indices = @transform_6, window_bounds = array<i64: 2, 8, 32>}]} {
    %c0_i32 = arith.constant 0 : i32
    %0 = arith.cmpi eq, %arg1, %c0_i32 : i32
    %1 = arith.extui %0 : i1 to i32
    %c0_i32_0 = arith.constant 0 : i32
    %2 = arith.cmpi ne, %1, %c0_i32_0 : i32
    scf.if %2 {
      %c0_55 = arith.constant 0 : index
      %c0_56 = arith.constant 0 : index
      %c0_57 = arith.constant 0 : index
      %175 = vector.load %arg2[%c0_55, %c0_56, %c0_57] : memref<2x8x32xf32, #tpu.memory_space<vmem>>, vector<2x8x32xf32>
      %c0_58 = arith.constant 0 : index
      %c0_59 = arith.constant 0 : index
      %c0_60 = arith.constant 0 : index
      %176 = vector.load %arg8[%c0_58, %c0_59, %c0_60] : memref<2x8x32xf32, #tpu.memory_space<vmem>>, vector<2x8x32xf32>
      tpu.vector_store %arg8[%c0_58, %c0_59, %c0_60], %175 {strides = array<i32>} : memref<2x8x32xf32, #tpu.memory_space<vmem>>, vector<2x8x32xf32>,
    } else {
    }
    %c0 = arith.constant 0 : index
    %c0_1 = arith.constant 0 : index
    %c0_2 = arith.constant 0 : index
    %3 = vector.load %arg8[%c0, %c0_1, %c0_2] : memref<2x8x32xf32, #tpu.memory_space<vmem>>, vector<2x8x32xf32>
    %4 = vector.shape_cast %3 : vector<2x8x32xf32> to vector<16x32xf32>
    %5 = arith.truncf %4 : vector<16x32xf32> to vector<16x32xbf16>
    %c0_3 = arith.constant 0 : index
    %c0_4 = arith.constant 0 : index
    %c0_5 = arith.constant 0 : index
    %6 = vector.load %arg3[%c0_3, %c0_4, %c0_5] : memref<1x32x96xbf16, #tpu.memory_space<vmem>>, vector<1x32x96xbf16>
    %7 = vector.shape_cast %6 : vector<1x32x96xbf16> to vector<32x96xbf16>
    %cst = arith.constant dense<0.000000e+00> : vector<16x96xf32>
    %8 = tpu.matmul %5, %7, %cst {dimension_numbers = #tpu.dot_dimension_numbers<[1], [0], [0], [1], [0, 0, 1, 1], [], []>} : vector<16x32xbf16>, vector<32x96xbf16>, vector<16x96xf32> -> vector<16x96xf32>
    %9 = vector.extract_strided_slice %8 {offsets = [0, 0], sizes = [16, 8], strides = [1, 1]} : vector<16x96xf32> to vector<16x8xf32>
    %cst_6 = arith.constant 0.353553385 : f32
    %10 = vector.broadcast %cst_6 : f32 to vector<16x8xf32>
    %11 = arith.mulf %9, %10 : vector<16x8xf32>
    %12 = arith.truncf %11 : vector<16x8xf32> to vector<16x8xbf16>
    %13 = vector.shape_cast %12 : vector<16x8xbf16> to vector<2x8x8xbf16>
    %14 = vector.extract_strided_slice %8 {offsets = [0, 32], sizes = [16, 8], strides = [1, 1]} : vector<16x96xf32> to vector<16x8xf32>
    %15 = arith.truncf %14 : vector<16x8xf32> to vector<16x8xbf16>
    %16 = vector.shape_cast %15 : vector<16x8xbf16> to vector<2x8x8xbf16>
    %17 = vector.extract_strided_slice %8 {offsets = [0, 64], sizes = [16, 8], strides = [1, 1]} : vector<16x96xf32> to vector<16x8xf32>
    %18 = arith.truncf %17 : vector<16x8xf32> to vector<16x8xbf16>
    %19 = vector.shape_cast %18 : vector<16x8xbf16> to vector<2x8x8xbf16>
    "tpu.trace_start"() <{level = 10 : i32, message = "bqd,bkd->bqk"}> : () -> ()
    %cst_7 = arith.constant dense<0.000000e+00> : vector<2x8x8xf32>
    %20 = tpu.matmul %13, %16, %cst_7 {dimension_numbers = #tpu.dot_dimension_numbers<[2], [2], [1], [1], [0, 0, 0, 1, 1, 1], [0], [0]>} : vector<2x8x8xbf16>, vector<2x8x8xbf16>, vector<2x8x8xf32> -> vector<2x8x8xf32>
    "tpu.trace_stop"() : () -> ()
    %cst_8 = arith.constant dense<0xFF800000> : vector<2x8xf32>
    %21 = vector.multi_reduction <maximumf>, %20, %cst_8 [2] : vector<2x8x8xf32> to vector<2x8xf32>
    %22 = vector.shape_cast %21 : vector<2x8xf32> to vector<2x8x1xf32>
    %23 = vector.broadcast %22 : vector<2x8x1xf32> to vector<2x8x8xf32>
    %24 = arith.subf %20, %23 : vector<2x8x8xf32>
    %25 = math.exp %24 : vector<2x8x8xf32>
    %cst_9 = arith.constant dense<0.000000e+00> : vector<2x8xf32>
    %26 = vector.multi_reduction <add>, %25, %cst_9 [2] : vector<2x8x8xf32> to vector<2x8xf32>
    %27 = vector.shape_cast %26 : vector<2x8xf32> to vector<2x8x1xf32>
    %28 = tpu.reciprocal %27 {approx = true} : vector<2x8x1xf32> -> vector<2x8x1xf32>
    %29 = vector.broadcast %28 : vector<2x8x1xf32> to vector<2x8x8xf32>
    %30 = arith.mulf %25, %29 : vector<2x8x8xf32>
    %31 = arith.truncf %30 : vector<2x8x8xf32> to vector<2x8x8xbf16>
    "tpu.trace_start"() <{level = 10 : i32, message = "bqk,bkd->bqd"}> : () -> ()
    %cst_10 = arith.constant dense<0.000000e+00> : vector<2x8x8xf32>
    %32 = tpu.matmul %31, %19, %cst_10 {dimension_numbers = #tpu.dot_dimension_numbers<[2], [1], [1], [2], [0, 0, 0, 1, 1, 2], [0], [0]>} : vector<2x8x8xbf16>, vector<2x8x8xbf16>, vector<2x8x8xf32> -> vector<2x8x8xf32>
    "tpu.trace_stop"() : () -> ()
    %33 = vector.extract_strided_slice %8 {offsets = [0, 8], sizes = [16, 8], strides = [1, 1]} : vector<16x96xf32> to vector<16x8xf32>
    %cst_11 = arith.constant 0.353553385 : f32
    %34 = vector.broadcast %cst_11 : f32 to vector<16x8xf32>
    %35 = arith.mulf %33, %34 : vector<16x8xf32>
    %36 = arith.truncf %35 : vector<16x8xf32> to vector<16x8xbf16>
    %37 = vector.shape_cast %36 : vector<16x8xbf16> to vector<2x8x8xbf16>
    %38 = vector.extract_strided_slice %8 {offsets = [0, 40], sizes = [16, 8], strides = [1, 1]} : vector<16x96xf32> to vector<16x8xf32>
    %39 = arith.truncf %38 : vector<16x8xf32> to vector<16x8xbf16>
    %40 = vector.shape_cast %39 : vector<16x8xbf16> to vector<2x8x8xbf16>
    %41 = vector.extract_strided_slice %8 {offsets = [0, 72], sizes = [16, 8], strides = [1, 1]} : vector<16x96xf32> to vector<16x8xf32>
    %42 = arith.truncf %41 : vector<16x8xf32> to vector<16x8xbf16>
    %43 = vector.shape_cast %42 : vector<16x8xbf16> to vector<2x8x8xbf16>
    "tpu.trace_start"() <{level = 10 : i32, message = "bqd,bkd->bqk"}> : () -> ()
    %cst_12 = arith.constant dense<0.000000e+00> : vector<2x8x8xf32>
    %44 = tpu.matmul %37, %40, %cst_12 {dimension_numbers = #tpu.dot_dimension_numbers<[2], [2], [1], [1], [0, 0, 0, 1, 1, 1], [0], [0]>} : vector<2x8x8xbf16>, vector<2x8x8xbf16>, vector<2x8x8xf32> -> vector<2x8x8xf32>
    "tpu.trace_stop"() : () -> ()
    %cst_13 = arith.constant dense<0xFF800000> : vector<2x8xf32>
    %45 = vector.multi_reduction <maximumf>, %44, %cst_13 [2] : vector<2x8x8xf32> to vector<2x8xf32>
    %46 = vector.shape_cast %45 : vector<2x8xf32> to vector<2x8x1xf32>
    %47 = vector.broadcast %46 : vector<2x8x1xf32> to vector<2x8x8xf32>
    %48 = arith.subf %44, %47 : vector<2x8x8xf32>
    %49 = math.exp %48 : vector<2x8x8xf32>
    %cst_14 = arith.constant dense<0.000000e+00> : vector<2x8xf32>
    %50 = vector.multi_reduction <add>, %49, %cst_14 [2] : vector<2x8x8xf32> to vector<2x8xf32>
    %51 = vector.shape_cast %50 : vector<2x8xf32> to vector<2x8x1xf32>
    %52 = tpu.reciprocal %51 {approx = true} : vector<2x8x1xf32> -> vector<2x8x1xf32>
    %53 = vector.broadcast %52 : vector<2x8x1xf32> to vector<2x8x8xf32>
    %54 = arith.mulf %49, %53 : vector<2x8x8xf32>
    %55 = arith.truncf %54 : vector<2x8x8xf32> to vector<2x8x8xbf16>
    "tpu.trace_start"() <{level = 10 : i32, message = "bqk,bkd->bqd"}> : () -> ()
    %cst_15 = arith.constant dense<0.000000e+00> : vector<2x8x8xf32>
    %56 = tpu.matmul %55, %43, %cst_15 {dimension_numbers = #tpu.dot_dimension_numbers<[2], [1], [1], [2], [0, 0, 0, 1, 1, 2], [0], [0]>} : vector<2x8x8xbf16>, vector<2x8x8xbf16>, vector<2x8x8xf32> -> vector<2x8x8xf32>
    "tpu.trace_stop"() : () -> ()
    %57 = vector.extract_strided_slice %8 {offsets = [0, 16], sizes = [16, 8], strides = [1, 1]} : vector<16x96xf32> to vector<16x8xf32>
    %cst_16 = arith.constant 0.353553385 : f32
    %58 = vector.broadcast %cst_16 : f32 to vector<16x8xf32>
    %59 = arith.mulf %57, %58 : vector<16x8xf32>
    %60 = arith.truncf %59 : vector<16x8xf32> to vector<16x8xbf16>
    %61 = vector.shape_cast %60 : vector<16x8xbf16> to vector<2x8x8xbf16>
    %62 = vector.extract_strided_slice %8 {offsets = [0, 48], sizes = [16, 8], strides = [1, 1]} : vector<16x96xf32> to vector<16x8xf32>
    %63 = arith.truncf %62 : vector<16x8xf32> to vector<16x8xbf16>
    %64 = vector.shape_cast %63 : vector<16x8xbf16> to vector<2x8x8xbf16>
    %65 = vector.extract_strided_slice %8 {offsets = [0, 80], sizes = [16, 8], strides = [1, 1]} : vector<16x96xf32> to vector<16x8xf32>
    %66 = arith.truncf %65 : vector<16x8xf32> to vector<16x8xbf16>
    %67 = vector.shape_cast %66 : vector<16x8xbf16> to vector<2x8x8xbf16>
    "tpu.trace_start"() <{level = 10 : i32, message = "bqd,bkd->bqk"}> : () -> ()
    %cst_17 = arith.constant dense<0.000000e+00> : vector<2x8x8xf32>
    %68 = tpu.matmul %61, %64, %cst_17 {dimension_numbers = #tpu.dot_dimension_numbers<[2], [2], [1], [1], [0, 0, 0, 1, 1, 1], [0], [0]>} : vector<2x8x8xbf16>, vector<2x8x8xbf16>, vector<2x8x8xf32> -> vector<2x8x8xf32>
    "tpu.trace_stop"() : () -> ()
    %cst_18 = arith.constant dense<0xFF800000> : vector<2x8xf32>
    %69 = vector.multi_reduction <maximumf>, %68, %cst_18 [2] : vector<2x8x8xf32> to vector<2x8xf32>
    %70 = vector.shape_cast %69 : vector<2x8xf32> to vector<2x8x1xf32>
    %71 = vector.broadcast %70 : vector<2x8x1xf32> to vector<2x8x8xf32>
    %72 = arith.subf %68, %71 : vector<2x8x8xf32>
    %73 = math.exp %72 : vector<2x8x8xf32>
    %cst_19 = arith.constant dense<0.000000e+00> : vector<2x8xf32>
    %74 = vector.multi_reduction <add>, %73, %cst_19 [2] : vector<2x8x8xf32> to vector<2x8xf32>
    %75 = vector.shape_cast %74 : vector<2x8xf32> to vector<2x8x1xf32>
    %76 = tpu.reciprocal %75 {approx = true} : vector<2x8x1xf32> -> vector<2x8x1xf32>
    %77 = vector.broadcast %76 : vector<2x8x1xf32> to vector<2x8x8xf32>
    %78 = arith.mulf %73, %77 : vector<2x8x8xf32>
    %79 = arith.truncf %78 : vector<2x8x8xf32> to vector<2x8x8xbf16>
    "tpu.trace_start"() <{level = 10 : i32, message = "bqk,bkd->bqd"}> : () -> ()
    %cst_20 = arith.constant dense<0.000000e+00> : vector<2x8x8xf32>
    %80 = tpu.matmul %79, %67, %cst_20 {dimension_numbers = #tpu.dot_dimension_numbers<[2], [1], [1], [2], [0, 0, 0, 1, 1, 2], [0], [0]>} : vector<2x8x8xbf16>, vector<2x8x8xbf16>, vector<2x8x8xf32> -> vector<2x8x8xf32>
    "tpu.trace_stop"() : () -> ()
    %81 = vector.extract_strided_slice %8 {offsets = [0, 24], sizes = [16, 8], strides = [1, 1]} : vector<16x96xf32> to vector<16x8xf32>
    %cst_21 = arith.constant 0.353553385 : f32
    %82 = vector.broadcast %cst_21 : f32 to vector<16x8xf32>
    %83 = arith.mulf %81, %82 : vector<16x8xf32>
    %84 = arith.truncf %83 : vector<16x8xf32> to vector<16x8xbf16>
    %85 = vector.shape_cast %84 : vector<16x8xbf16> to vector<2x8x8xbf16>
    %86 = vector.extract_strided_slice %8 {offsets = [0, 56], sizes = [16, 8], strides = [1, 1]} : vector<16x96xf32> to vector<16x8xf32>
    %87 = arith.truncf %86 : vector<16x8xf32> to vector<16x8xbf16>
    %88 = vector.shape_cast %87 : vector<16x8xbf16> to vector<2x8x8xbf16>
    %89 = vector.extract_strided_slice %8 {offsets = [0, 88], sizes = [16, 8], strides = [1, 1]} : vector<16x96xf32> to vector<16x8xf32>
    %90 = arith.truncf %89 : vector<16x8xf32> to vector<16x8xbf16>
    %91 = vector.shape_cast %90 : vector<16x8xbf16> to vector<2x8x8xbf16>
    "tpu.trace_start"() <{level = 10 : i32, message = "bqd,bkd->bqk"}> : () -> ()
    %cst_22 = arith.constant dense<0.000000e+00> : vector<2x8x8xf32>
    %92 = tpu.matmul %85, %88, %cst_22 {dimension_numbers = #tpu.dot_dimension_numbers<[2], [2], [1], [1], [0, 0, 0, 1, 1, 1], [0], [0]>} : vector<2x8x8xbf16>, vector<2x8x8xbf16>, vector<2x8x8xf32> -> vector<2x8x8xf32>
    "tpu.trace_stop"() : () -> ()
    %cst_23 = arith.constant dense<0xFF800000> : vector<2x8xf32>
    %93 = vector.multi_reduction <maximumf>, %92, %cst_23 [2] : vector<2x8x8xf32> to vector<2x8xf32>
    %94 = vector.shape_cast %93 : vector<2x8xf32> to vector<2x8x1xf32>
    %95 = vector.broadcast %94 : vector<2x8x1xf32> to vector<2x8x8xf32>
    %96 = arith.subf %92, %95 : vector<2x8x8xf32>
    %97 = math.exp %96 : vector<2x8x8xf32>
    %cst_24 = arith.constant dense<0.000000e+00> : vector<2x8xf32>
    %98 = vector.multi_reduction <add>, %97, %cst_24 [2] : vector<2x8x8xf32> to vector<2x8xf32>
    %99 = vector.shape_cast %98 : vector<2x8xf32> to vector<2x8x1xf32>
    %100 = tpu.reciprocal %99 {approx = true} : vector<2x8x1xf32> -> vector<2x8x1xf32>
    %101 = vector.broadcast %100 : vector<2x8x1xf32> to vector<2x8x8xf32>
    %102 = arith.mulf %97, %101 : vector<2x8x8xf32>
    %103 = arith.truncf %102 : vector<2x8x8xf32> to vector<2x8x8xbf16>
    "tpu.trace_start"() <{level = 10 : i32, message = "bqk,bkd->bqd"}> : () -> ()
    %cst_25 = arith.constant dense<0.000000e+00> : vector<2x8x8xf32>
    %104 = tpu.matmul %103, %91, %cst_25 {dimension_numbers = #tpu.dot_dimension_numbers<[2], [1], [1], [2], [0, 0, 0, 1, 1, 2], [0], [0]>} : vector<2x8x8xbf16>, vector<2x8x8xbf16>, vector<2x8x8xf32> -> vector<2x8x8xf32>
    "tpu.trace_stop"() : () -> ()
    %105 = tpu.concatenate %32, %56, %80, %104 in 2 : vector<2x8x8xf32>, vector<2x8x8xf32>, vector<2x8x8xf32>, vector<2x8x8xf32> -> vector<2x8x32xf32>
    %106 = vector.shape_cast %105 : vector<2x8x32xf32> to vector<16x32xf32>
    %107 = arith.truncf %106 : vector<16x32xf32> to vector<16x32xbf16>
    %c0_26 = arith.constant 0 : index
    %c0_27 = arith.constant 0 : index
    %c0_28 = arith.constant 0 : index
    %108 = vector.load %arg4[%c0_26, %c0_27, %c0_28] : memref<1x32x32xbf16, #tpu.memory_space<vmem>>, vector<1x32x32xbf16>
    %109 = vector.shape_cast %108 : vector<1x32x32xbf16> to vector<32x32xbf16>
    %cst_29 = arith.constant dense<0.000000e+00> : vector<16x32xf32>
    %110 = tpu.matmul %107, %109, %cst_29 {dimension_numbers = #tpu.dot_dimension_numbers<[1], [0], [0], [1], [0, 0, 1, 1], [], []>} : vector<16x32xbf16>, vector<32x32xbf16>, vector<16x32xf32> -> vector<16x32xf32>
    %c0_30 = arith.constant 0 : index
    %c0_31 = arith.constant 0 : index
    %c0_32 = arith.constant 0 : index
    %111 = vector.load %arg5[%c0_30, %c0_31, %c0_32] : memref<1x4x32xf32, #tpu.memory_space<vmem>>, vector<1x4x32xf32>
    %112 = vector.shape_cast %111 : vector<1x4x32xf32> to vector<4x32xf32>
    %113 = arith.addf %4, %110 : vector<16x32xf32>
    %114 = vector.extract_strided_slice %112 {offsets = [0, 0], sizes = [1, 32], strides = [1, 1]} : vector<4x32xf32> to vector<1x32xf32>
    %115 = vector.extract_strided_slice %112 {offsets = [1, 0], sizes = [1, 32], strides = [1, 1]} : vector<4x32xf32> to vector<1x32xf32>
    %cst_33 = arith.constant dense<0.000000e+00> : vector<16xf32>
    %116 = vector.multi_reduction <add>, %113, %cst_33 [1] : vector<16x32xf32> to vector<16xf32>
    %117 = vector.shape_cast %116 : vector<16xf32> to vector<16x1xf32>
    %cst_34 = arith.constant 3.200000e+01 : f32
    %118 = vector.broadcast %cst_34 : f32 to vector<16x1xf32>
    %119 = arith.divf %117, %118 : vector<16x1xf32>
    %120 = vector.broadcast %119 : vector<16x1xf32> to vector<16x32xf32>
    %121 = arith.subf %113, %120 : vector<16x32xf32>
    %122 = arith.mulf %121, %121 : vector<16x32xf32>
    %cst_35 = arith.constant dense<0.000000e+00> : vector<16xf32>
    %123 = vector.multi_reduction <add>, %122, %cst_35 [1] : vector<16x32xf32> to vector<16xf32>
    %124 = vector.shape_cast %123 : vector<16xf32> to vector<16x1xf32>
    %cst_36 = arith.constant 3.200000e+01 : f32
    %125 = vector.broadcast %cst_36 : f32 to vector<16x1xf32>
    %126 = arith.divf %124, %125 : vector<16x1xf32>
    %127 = vector.broadcast %119 : vector<16x1xf32> to vector<16x32xf32>
    %128 = arith.subf %113, %127 : vector<16x32xf32>
    %cst_37 = arith.constant 9.99999974E-6 : f32
    %129 = vector.broadcast %cst_37 : f32 to vector<16x1xf32>
    %130 = arith.addf %126, %129 : vector<16x1xf32>
    %131 = math.rsqrt %130 : vector<16x1xf32>
    %132 = vector.broadcast %131 : vector<16x1xf32> to vector<16x32xf32>
    %133 = arith.mulf %128, %132 : vector<16x32xf32>
    %134 = vector.broadcast %114 : vector<1x32xf32> to vector<16x32xf32>
    %135 = arith.mulf %133, %134 : vector<16x32xf32>
    %136 = vector.broadcast %115 : vector<1x32xf32> to vector<16x32xf32>
    %137 = arith.addf %135, %136 : vector<16x32xf32>
    %138 = arith.truncf %137 : vector<16x32xf32> to vector<16x32xbf16>
    %c0_38 = arith.constant 0 : index
    %c0_39 = arith.constant 0 : index
    %c0_40 = arith.constant 0 : index
    %139 = vector.load %arg6[%c0_38, %c0_39, %c0_40] : memref<1x32x128xbf16, #tpu.memory_space<vmem>>, vector<1x32x128xbf16>
    %140 = vector.shape_cast %139 : vector<1x32x128xbf16> to vector<32x128xbf16>
    %cst_41 = arith.constant dense<0.000000e+00> : vector<16x128xf32>
    %141 = tpu.matmul %138, %140, %cst_41 {dimension_numbers = #tpu.dot_dimension_numbers<[1], [0], [0], [1], [0, 0, 1, 1], [], []>} : vector<16x32xbf16>, vector<32x128xbf16>, vector<16x128xf32> -> vector<16x128xf32>
    %cst_42 = arith.constant 0.000000e+00 : f32
    %142 = vector.broadcast %cst_42 : f32 to vector<16x128xf32>
    %143 = arith.maximumf %141, %142 : vector<16x128xf32>
    %144 = arith.truncf %143 : vector<16x128xf32> to vector<16x128xbf16>
    %c0_43 = arith.constant 0 : index
    %c0_44 = arith.constant 0 : index
    %c0_45 = arith.constant 0 : index
    %145 = vector.load %arg7[%c0_43, %c0_44, %c0_45] : memref<1x128x32xbf16, #tpu.memory_space<vmem>>, vector<1x128x32xbf16>
    %146 = vector.shape_cast %145 : vector<1x128x32xbf16> to vector<128x32xbf16>
    %cst_46 = arith.constant dense<0.000000e+00> : vector<16x32xf32>
    %147 = tpu.matmul %144, %146, %cst_46 {dimension_numbers = #tpu.dot_dimension_numbers<[1], [0], [0], [1], [0, 0, 1, 1], [], []>} : vector<16x128xbf16>, vector<128x32xbf16>, vector<16x32xf32> -> vector<16x32xf32>
    %148 = arith.addf %137, %147 : vector<16x32xf32>
    %149 = vector.extract_strided_slice %112 {offsets = [2, 0], sizes = [1, 32], strides = [1, 1]} : vector<4x32xf32> to vector<1x32xf32>
    %150 = vector.extract_strided_slice %112 {offsets = [3, 0], sizes = [1, 32], strides = [1, 1]} : vector<4x32xf32> to vector<1x32xf32>
    %cst_47 = arith.constant dense<0.000000e+00> : vector<16xf32>
    %151 = vector.multi_reduction <add>, %148, %cst_47 [1] : vector<16x32xf32> to vector<16xf32>
    %152 = vector.shape_cast %151 : vector<16xf32> to vector<16x1xf32>
    %cst_48 = arith.constant 3.200000e+01 : f32
    %153 = vector.broadcast %cst_48 : f32 to vector<16x1xf32>
    %154 = arith.divf %152, %153 : vector<16x1xf32>
    %155 = vector.broadcast %154 : vector<16x1xf32> to vector<16x32xf32>
    %156 = arith.subf %148, %155 : vector<16x32xf32>
    %157 = arith.mulf %156, %156 : vector<16x32xf32>
    %cst_49 = arith.constant dense<0.000000e+00> : vector<16xf32>
    %158 = vector.multi_reduction <add>, %157, %cst_49 [1] : vector<16x32xf32> to vector<16xf32>
    %159 = vector.shape_cast %158 : vector<16xf32> to vector<16x1xf32>
    %cst_50 = arith.constant 3.200000e+01 : f32
    %160 = vector.broadcast %cst_50 : f32 to vector<16x1xf32>
    %161 = arith.divf %159, %160 : vector<16x1xf32>
    %162 = vector.broadcast %154 : vector<16x1xf32> to vector<16x32xf32>
    %163 = arith.subf %148, %162 : vector<16x32xf32>
    %cst_51 = arith.constant 9.99999974E-6 : f32
    %164 = vector.broadcast %cst_51 : f32 to vector<16x1xf32>
    %165 = arith.addf %161, %164 : vector<16x1xf32>
    %166 = math.rsqrt %165 : vector<16x1xf32>
    %167 = vector.broadcast %166 : vector<16x1xf32> to vector<16x32xf32>
    %168 = arith.mulf %163, %167 : vector<16x32xf32>
    %169 = vector.broadcast %149 : vector<1x32xf32> to vector<16x32xf32>
    %170 = arith.mulf %168, %169 : vector<16x32xf32>
    %171 = vector.broadcast %150 : vector<1x32xf32> to vector<16x32xf32>
    %172 = arith.addf %170, %171 : vector<16x32xf32>
    %173 = vector.shape_cast %172 : vector<16x32xf32> to vector<2x8x32xf32>
    %c0_52 = arith.constant 0 : index
    %c0_53 = arith.constant 0 : index
    %c0_54 = arith.constant 0 : index
    %174 = vector.load %arg8[%c0_52, %c0_53, %c0_54] : memref<2x8x32xf32, #tpu.memory_space<vmem>>, vector<2x8x32xf32>
    tpu.vector_store %arg8[%c0_52, %c0_53, %c0_54], %173 {strides = array<i32>} : memref<2x8x32xf32, #tpu.memory_space<vmem>>, vector<2x8x32xf32>,
    return
  }
  func.func @transform_0(%arg0: i32, %arg1: i32) -> (i32, i32, i32) {
    %c0_i32 = arith.constant 0 : i32
    %c0_i32_0 = arith.constant 0 : i32
    %c0_i32_1 = arith.constant 0 : i32
    return %arg0, %c0_i32, %c0_i32_0 : i32, i32, i32
  }
  func.func @transform_1(%arg0: i32, %arg1: i32) -> (i32, i32, i32) {
    %c0_i32 = arith.constant 0 : i32
    %c0_i32_0 = arith.constant 0 : i32
    %c0_i32_1 = arith.constant 0 : i32
    return %arg1, %c0_i32, %c0_i32_0 : i32, i32, i32
  }
  func.func @transform_2(%arg0: i32, %arg1: i32) -> (i32, i32, i32) {
    %c0_i32 = arith.constant 0 : i32
    %c0_i32_0 = arith.constant 0 : i32
    %c0_i32_1 = arith.constant 0 : i32
    return %arg1, %c0_i32, %c0_i32_0 : i32, i32, i32
  }
  func.func @transform_3(%arg0: i32, %arg1: i32) -> (i32, i32, i32) {
    %c0_i32 = arith.constant 0 : i32
    %c0_i32_0 = arith.constant 0 : i32
    %c0_i32_1 = arith.constant 0 : i32
    return %arg1, %c0_i32, %c0_i32_0 : i32, i32, i32
  }
  func.func @transform_4(%arg0: i32, %arg1: i32) -> (i32, i32, i32) {
    %c0_i32 = arith.constant 0 : i32
    %c0_i32_0 = arith.constant 0 : i32
    %c0_i32_1 = arith.constant 0 : i32
    return %arg1, %c0_i32, %c0_i32_0 : i32, i32, i32
  }
  func.func @transform_5(%arg0: i32, %arg1: i32) -> (i32, i32, i32) {
    %c0_i32 = arith.constant 0 : i32
    %c0_i32_0 = arith.constant 0 : i32
    %c0_i32_1 = arith.constant 0 : i32
    return %arg1, %c0_i32, %c0_i32_0 : i32, i32, i32
  }
  func.func @transform_6(%arg0: i32, %arg1: i32) -> (i32, i32, i32) {
    %c0_i32 = arith.constant 0 : i32
    %c0_i32_0 = arith.constant 0 : i32
    %c0_i32_1 = arith.constant 0 : i32
    return %arg0, %c0_i32, %c0_i32_0 : i32, i32, i32
  }
}

</mosaic_0001>

<llo_original>
// kernel: tpu_custom_call.1
$region0: #{tpu_custom_call.1}
  #allocation0 [shape = 'u32[]', space=smem, size = 0x4, offset = 0x4, fixed_abs, tag = 'smem constant byte address 0x4 - core index']
  #allocation1 [shape = 'u32[144,128]{1,0:T(1,128)}', space=vmem, size = 0x12000, scoped, tag = 'internal scratch']
  %s0 = inlined_call_operand.hbm [shape: f32[2,8,32], index: 0, kind: input, shape index: {}, may-alias: {0,6}]
  %s1 = inlined_call_operand.vmem [shape: bf16[2,32,96], index: 1, kind: input, shape index: {}]
  %s2 = inlined_call_operand.vmem [shape: bf16[2,32,32], index: 2, kind: input, shape index: {}]
  %s3 = inlined_call_operand.vmem [shape: f32[2,4,32], index: 3, kind: input, shape index: {}]
  %s4 = inlined_call_operand.vmem [shape: bf16[2,32,128], index: 4, kind: input, shape index: {}]
  %s5 = inlined_call_operand.vmem [shape: bf16[2,128,32], index: 5, kind: input, shape index: {}]
  %s6 = inlined_call_operand.hbm [shape: f32[2,8,32], index: 6, kind: output, shape index: {}, may-alias: {0,6}]
  %s7 = sld [smem:[#allocation0]]
  $region65: #{tpu_custom_call.1} parent=0
    _
  %s9 = ssub.s32 1, %s7
  %s10 = scalar_select 0, %s9, %s7
  $region1: #{tpu_custom_call.1} parent=0
    #allocation2 [shape = 'u8[8192]{0}', space=vmem, size = 0x2000, scoped, tag = 'input window, operand 0, single buffered']
    #allocation3 [shape = 's32[2]{0}', space=sflag, size = 0x8, scoped, tag = 'scoped memory for tpu_custom_call.1']
    #allocation4 [shape = 's32[2]{0}', space=sflag, size = 0x8, scoped, tag = 'scoped memory for tpu_custom_call.1']
    #allocation5 [shape = 'u8[8192]{0}', space=vmem, size = 0x2000, scoped, tag = 'output window, operand 0, single buffered']
    %11 = vsyncpa [#allocation3], 0
    %12 = vsyncpa [#allocation4], 0
    loop: start=0, step=1, limit=4
    $region2: #{tpu_custom_call.1} parent=1 // loop_pre_header
      _
    $region3: #{tpu_custom_call.1} parent=1 // loop_header
      %s14 = sphi 0, %s18
      %p15 = scmp.ge.s32.totalorder %s14, 4
      %s21 = sphi 0, %s33
      %s22 = sphi 0, %s29
      %s23 = sphi 0, %s21
      %s24 = sphi 0, %s22
      %s25 = sphi 0, %s23
      %s26 = sphi 0, %s24
      %s36 = sphi 0, %s38
      %s39 = sphi 0, %s36
      %s40 = sphi 0, %s39
      %s56 = sphi 0, %s40
      %s62 = sphi 0, %s64
      %s65 = sphi 0, %s62
      %s66 = sphi 0, %s65
      %s82 = sphi 0, %s66
      %s88 = sphi 0, %s90
      %s91 = sphi 0, %s88
      %s92 = sphi 0, %s91
      %s108 = sphi 0, %s92
      %s114 = sphi 0, %s116
      %s117 = sphi 0, %s114
      %s118 = sphi 0, %s117
      %s134 = sphi 0, %s118
      %s140 = sphi 0, %s142
      %s143 = sphi 0, %s140
      %s144 = sphi 0, %s143
      %s160 = sphi 0, %s144
      %s166 = sphi 0, %s168
      %s169 = sphi 0, %s166
      %s170 = sphi 0, %s169
      %s186 = sphi 0, %s170
      %s192 = sphi 0, %s194
      %s195 = sphi 0, %s192
      %s196 = sphi 0, %s195
      %s212 = sphi 0, %s196
    $region4: #{tpu_custom_call.1} parent=1 // loop_header_branch
      %17 = sbr.rel (%p15) target = $region8
    $region5: #{tpu_custom_call.1} parent=1 // loop_body
      %s19 = ssub.s32 %s14, 1
      %s20 = ssub.s32 %s14, 2
      %s27 = sadd.s32 1, %s22
      %p28 = scmp.ge.s32.totalorder %s27, 2
      %s29 = scalar_select %p28, 0, %s27
      %s30 = sadd.s32 1, %s21
      %s31 = scalar_select %p28, %s30, %s21
      %p32 = scmp.ge.s32.totalorder %s31, 1
      %s33 = scalar_select %p32, 0, %s31
      %s34 = ssub.s32 %s21, %s33
      %p35 = scmp.eq.s32.totalorder %s34, 0
      %s37 = sadd.s32 %s36, 1
      %s38 = scalar_select %p35, %s36, %s37
      %p41 = pneg %p35
      %p42 = scmp.eq.s32.totalorder %s14, 1
      %p43 = por %p41, %p42
      %p44 = scmp.ne.s32.totalorder %s36, %s39
      %p45 = scmp.eq.s32.totalorder %s14, 0
      %p46 = por %p44, %p45
      %p47 = scmp.ne.s32.totalorder %s36, %s39
      %p48 = scmp.eq.s32.totalorder %s19, 1
      %p49 = por %p47, %p48
      %p50 = scmp.ne.s32.totalorder %s39, %s40
      %p51 = scmp.eq.s32.totalorder %s19, 0
      %p52 = por %p50, %p51
      %p53 = scmp.ne.s32.totalorder %s39, %s40
      %p54 = scmp.eq.s32.totalorder %s20, 1
      %p55 = por %p53, %p54
      %p57 = scmp.ne.s32.totalorder %s40, %s56
      %p58 = scmp.eq.s32.totalorder %s20, 0
      %p59 = por %p57, %p58
      %s60 = ssub.s32 %s22, %s29
      %p61 = scmp.eq.s32.totalorder %s60, 0
      %s63 = sadd.s32 %s62, 1
      %s64 = scalar_select %p61, %s62, %s63
      %p67 = pneg %p61
      %p68 = scmp.eq.s32.totalorder %s14, 1
      %p69 = por %p67, %p68
      %p70 = scmp.ne.s32.totalorder %s62, %s65
      %p71 = scmp.eq.s32.totalorder %s14, 0
      %p72 = por %p70, %p71
      %p73 = scmp.ne.s32.totalorder %s62, %s65
      %p74 = scmp.eq.s32.totalorder %s19, 1
      %p75 = por %p73, %p74
      %p76 = scmp.ne.s32.totalorder %s65, %s66
      %p77 = scmp.eq.s32.totalorder %s19, 0
      %p78 = por %p76, %p77
      %p79 = scmp.ne.s32.totalorder %s65, %s66
      %p80 = scmp.eq.s32.totalorder %s20, 1
      %p81 = por %p79, %p80
      %p83 = scmp.ne.s32.totalorder %s66, %s82
      %p84 = scmp.eq.s32.totalorder %s20, 0
      %p85 = por %p83, %p84
      %s86 = ssub.s32 %s22, %s29
      %p87 = scmp.eq.s32.totalorder %s86, 0
      %s89 = sadd.s32 %s88, 1
      %s90 = scalar_select %p87, %s88, %s89
      %p93 = pneg %p87
      %p94 = scmp.eq.s32.totalorder %s14, 1
      %p95 = por %p93, %p94
      %p96 = scmp.ne.s32.totalorder %s88, %s91
      %p97 = scmp.eq.s32.totalorder %s14, 0
      %p98 = por %p96, %p97
      %p99 = scmp.ne.s32.totalorder %s88, %s91
      %p100 = scmp.eq.s32.totalorder %s19, 1
      %p101 = por %p99, %p100
      %p102 = scmp.ne.s32.totalorder %s91, %s92
      %p103 = scmp.eq.s32.totalorder %s19, 0
      %p104 = por %p102, %p103
      %p105 = scmp.ne.s32.totalorder %s91, %s92
      %p106 = scmp.eq.s32.totalorder %s20, 1
      %p107 = por %p105, %p106
      %p109 = scmp.ne.s32.totalorder %s92, %s108
      %p110 = scmp.eq.s32.totalorder %s20, 0
      %p111 = por %p109, %p110
      %s112 = ssub.s32 %s22, %s29
      %p113 = scmp.eq.s32.totalorder %s112, 0
      %s115 = sadd.s32 %s114, 1
      %s116 = scalar_select %p113, %s114, %s115
      %p119 = pneg %p113
      %p120 = scmp.eq.s32.totalorder %s14, 1
      %p121 = por %p119, %p120
      %p122 = scmp.ne.s32.totalorder %s114, %s117
      %p123 = scmp.eq.s32.totalorder %s14, 0
      %p124 = por %p122, %p123
      %p125 = scmp.ne.s32.totalorder %s114, %s117
      %p126 = scmp.eq.s32.totalorder %s19, 1
      %p127 = por %p125, %p126
      %p128 = scmp.ne.s32.totalorder %s117, %s118
      %p129 = scmp.eq.s32.totalorder %s19, 0
      %p130 = por %p128, %p129
      %p131 = scmp.ne.s32.totalorder %s117, %s118
      %p132 = scmp.eq.s32.totalorder %s20, 1
      %p133 = por %p131, %p132
      %p135 = scmp.ne.s32.totalorder %s118, %s134
      %p136 = scmp.eq.s32.totalorder %s20, 0
      %p137 = por %p135, %p136
      %s138 = ssub.s32 %s22, %s29
      %p139 = scmp.eq.s32.totalorder %s138, 0
      %s141 = sadd.s32 %s140, 1
      %s142 = scalar_select %p139, %s140, %s141
      %p145 = pneg %p139
      %p146 = scmp.eq.s32.totalorder %s14, 1
      %p147 = por %p145, %p146
      %p148 = scmp.ne.s32.totalorder %s140, %s143
      %p149 = scmp.eq.s32.totalorder %s14, 0
      %p150 = por %p148, %p149
      %p151 = scmp.ne.s32.totalorder %s140, %s143
      %p152 = scmp.eq.s32.totalorder %s19, 1
      %p153 = por %p151, %p152
      %p154 = scmp.ne.s32.totalorder %s143, %s144
      %p155 = scmp.eq.s32.totalorder %s19, 0
      %p156 = por %p154, %p155
      %p157 = scmp.ne.s32.totalorder %s143, %s144
      %p158 = scmp.eq.s32.totalorder %s20, 1
      %p159 = por %p157, %p158
      %p161 = scmp.ne.s32.totalorder %s144, %s160
      %p162 = scmp.eq.s32.totalorder %s20, 0
      %p163 = por %p161, %p162
      %s164 = ssub.s32 %s22, %s29
      %p165 = scmp.eq.s32.totalorder %s164, 0
      %s167 = sadd.s32 %s166, 1
      %s168 = scalar_select %p165, %s166, %s167
      %p171 = pneg %p165
      %p172 = scmp.eq.s32.totalorder %s14, 1
      %p173 = por %p171, %p172
      %p174 = scmp.ne.s32.totalorder %s166, %s169
      %p175 = scmp.eq.s32.totalorder %s14, 0
      %p176 = por %p174, %p175
      %p177 = scmp.ne.s32.totalorder %s166, %s169
      %p178 = scmp.eq.s32.totalorder %s19, 1
      %p179 = por %p177, %p178
      %p180 = scmp.ne.s32.totalorder %s169, %s170
      %p181 = scmp.eq.s32.totalorder %s19, 0
      %p182 = por %p180, %p181
      %p183 = scmp.ne.s32.totalorder %s169, %s170
      %p184 = scmp.eq.s32.totalorder %s20, 1
      %p185 = por %p183, %p184
      %p187 = scmp.ne.s32.totalorder %s170, %s186
      %p188 = scmp.eq.s32.totalorder %s20, 0
      %p189 = por %p187, %p188
      %s190 = ssub.s32 %s21, %s33
      %p191 = scmp.eq.s32.totalorder %s190, 0
      %s193 = sadd.s32 %s192, 1
      %s194 = scalar_select %p191, %s192, %s193
      %p197 = pneg %p191
      %p198 = scmp.eq.s32.totalorder %s14, 1
      %p199 = por %p197, %p198
      %p200 = scmp.ne.s32.totalorder %s192, %s195
      %p201 = scmp.eq.s32.totalorder %s14, 0
      %p202 = por %p200, %p201
      %p203 = scmp.ne.s32.totalorder %s192, %s195
      %p204 = scmp.eq.s32.totalorder %s19, 1
      %p205 = por %p203, %p204
      %p206 = scmp.ne.s32.totalorder %s195, %s196
      %p207 = scmp.eq.s32.totalorder %s19, 0
      %p208 = por %p206, %p207
      %p209 = scmp.ne.s32.totalorder %s195, %s196
      %p210 = scmp.eq.s32.totalorder %s20, 1
      %p211 = por %p209, %p210
      %p213 = scmp.ne.s32.totalorder %s196, %s212
      %p214 = scmp.eq.s32.totalorder %s20, 0
      %p215 = por %p213, %p214
      %p216 = scmp.le.s32.totalorder 1, %s14
      %p217 = scmp.lt.s32.totalorder %s14, 3
      %p218 = pnand %p216, %p217
      %p219 = pneg %p218
      // Predicated region
      $region9: #{tpu_custom_call.1} parent=5 // pred_check
        _
      $region10: #{tpu_custom_call.1} parent=5 // pred_check_branch
        %221 = sbr.rel (%p218) target = $region12
      $region11: #{tpu_custom_call.1} parent=5 // pred_region
        %s222 = ssub.s32 %s14, 1
        // Predicated region
        $region13: #{tpu_custom_call.1} parent=11 // pred_check
          %p223 = pneg %p52
        $region14: #{tpu_custom_call.1} parent=11 // pred_check_branch
          %225 = sbr.rel (%p223) target = $region16
        $region15: #{tpu_custom_call.1} parent=11 // pred_region
          %s226 = smul.u32 2, %s23
          %s228 = ssub.s32 256, 256
          %229 = vsyncadd [#allocation3], %s228
          %s230 = smul.addr %s226, 128
          %s231 = scalar_lea.hbm %s0, %s230
          %s232 = sshll.u32 [#allocation2], 4
          %s233 = int_to_ptr.vmem [resolvable:$true] %s232
          %238 = dma.hbm_to_vmem [thread:$0]  %s231, 256, %s233, [#allocation3], 128, 128, 8
        $region16: #{tpu_custom_call.1} parent=11 // pred_fallthru
          _
      $region12: #{tpu_custom_call.1} parent=5 // pred_fallthru
        _
      %p239 = scmp.lt.s32.totalorder %s14, 2
      // Predicated region
      $region17: #{tpu_custom_call.1} parent=5 // pred_check
        %p240 = pneg %p239
      $region18: #{tpu_custom_call.1} parent=5 // pred_check_branch
        %242 = sbr.rel (%p240) target = $region20
      $region19: #{tpu_custom_call.1} parent=5 // pred_region
        // Predicated region
        $region21: #{tpu_custom_call.1} parent=19 // pred_check
          %p243 = pneg %p72
        $region22: #{tpu_custom_call.1} parent=19 // pred_check_branch
          %245 = sbr.rel (%p243) target = $region24
        $region23: #{tpu_custom_call.1} parent=19 // pred_region
          %p246 = scmp.lt.s32.totalorder %s22, 1
          %s247 = scalar_select %p246, %s22, 1
          %s248 = smul.addr %s247, 4
          %s249 = smul.addr %s248, 4
          %s250 = scalar_lea.vmem %s1, %s249
        $region24: #{tpu_custom_call.1} parent=19 // pred_fallthru
          _
        // Predicated region
        $region25: #{tpu_custom_call.1} parent=19 // pred_check
          %p251 = pneg %p98
        $region26: #{tpu_custom_call.1} parent=19 // pred_check_branch
          %253 = sbr.rel (%p251) target = $region28
        $region27: #{tpu_custom_call.1} parent=19 // pred_region
          %p254 = scmp.lt.s32.totalorder %s22, 1
          %s255 = scalar_select %p254, %s22, 1
          %s256 = smul.addr %s255, 4
          %s257 = smul.addr %s256, 4
          %s258 = scalar_lea.vmem %s2, %s257
        $region28: #{tpu_custom_call.1} parent=19 // pred_fallthru
          _
        // Predicated region
        $region29: #{tpu_custom_call.1} parent=19 // pred_check
          %p259 = pneg %p124
        $region30: #{tpu_custom_call.1} parent=19 // pred_check_branch
          %261 = sbr.rel (%p259) target = $region32
        $region31: #{tpu_custom_call.1} parent=19 // pred_region
          %p262 = scmp.lt.s32.totalorder %s22, 1
          %s263 = scalar_select %p262, %s22, 1
          %s264 = smul.addr %s263, 4
          %s265 = scalar_lea.vmem %s3, %s264
        $region32: #{tpu_custom_call.1} parent=19 // pred_fallthru
          _
        // Predicated region
        $region33: #{tpu_custom_call.1} parent=19 // pred_check
          %p266 = pneg %p150
        $region34: #{tpu_custom_call.1} parent=19 // pred_check_branch
          %268 = sbr.rel (%p266) target = $region36
        $region35: #{tpu_custom_call.1} parent=19 // pred_region
          %p269 = scmp.lt.s32.totalorder %s22, 1
          %s270 = scalar_select %p269, %s22, 1
          %s271 = smul.addr %s270, 4
          %s272 = smul.addr %s271, 4
          %s273 = scalar_lea.vmem %s4, %s272
        $region36: #{tpu_custom_call.1} parent=19 // pred_fallthru
          _
        // Predicated region
        $region37: #{tpu_custom_call.1} parent=19 // pred_check
          %p274 = pneg %p176
        $region38: #{tpu_custom_call.1} parent=19 // pred_check_branch
          %276 = sbr.rel (%p274) target = $region40
        $region39: #{tpu_custom_call.1} parent=19 // pred_region
          %p277 = scmp.lt.s32.totalorder %s22, 1
          %s278 = scalar_select %p277, %s22, 1
          %s279 = smul.addr %s278, 16
          %s280 = smul.addr %s279, 4
          %s281 = scalar_lea.vmem %s5, %s280
        $region40: #{tpu_custom_call.1} parent=19 // pred_fallthru
          _
      $region20: #{tpu_custom_call.1} parent=5 // pred_fallthru
        _
      %p282 = scmp.le.s32.totalorder 1, %s14
      %p283 = scmp.lt.s32.totalorder %s14, 3
      %p284 = pnand %p282, %p283
      %p285 = pneg %p284
      // Predicated region
      $region41: #{tpu_custom_call.1} parent=5 // pred_check
        _
      $region42: #{tpu_custom_call.1} parent=5 // pred_check_branch
        %287 = sbr.rel (%p284) target = $region44
      $region43: #{tpu_custom_call.1} parent=5 // pred_region
        %s288 = ssub.s32 %s14, 1
        // Predicated region
        $region45: #{tpu_custom_call.1} parent=43 // pred_check
          %p289 = pneg %p52
        $region46: #{tpu_custom_call.1} parent=43 // pred_check_branch
          %291 = sbr.rel (%p289) target = $region48
        $region47: #{tpu_custom_call.1} parent=43 // pred_region
          %292 = dma.done [#allocation3], 256
        $region48: #{tpu_custom_call.1} parent=43 // pred_fallthru
          _
        %p293 = pneg %p52
        %p294 = pneg %p49
        %p295 = scmp.lt.s32.totalorder %s24, 1
        %s296 = scalar_select %p295, %s24, 1
        %s297 = smul.addr %s296, 4
        %s298 = smul.addr %s297, 4
        %s299 = scalar_lea.vmem %s1, %s298
        %p300 = pneg %p78
        %p301 = pneg %p75
        %p302 = scmp.lt.s32.totalorder %s24, 1
        %s303 = scalar_select %p302, %s24, 1
        %s304 = smul.addr %s303, 4
        %s305 = smul.addr %s304, 4
        %s306 = scalar_lea.vmem %s2, %s305
        %p307 = pneg %p104
        %p308 = pneg %p101
        %p309 = scmp.lt.s32.totalorder %s24, 1
        %s310 = scalar_select %p309, %s24, 1
        %s311 = smul.addr %s310, 4
        %s312 = scalar_lea.vmem %s3, %s311
        %p313 = pneg %p130
        %p314 = pneg %p127
        %p315 = scmp.lt.s32.totalorder %s24, 1
        %s316 = scalar_select %p315, %s24, 1
        %s317 = smul.addr %s316, 4
        %s318 = smul.addr %s317, 4
        %s319 = scalar_lea.vmem %s4, %s318
        %p320 = pneg %p156
        %p321 = pneg %p153
        %p322 = scmp.lt.s32.totalorder %s24, 1
        %s323 = scalar_select %p322, %s24, 1
        %s324 = smul.addr %s323, 16
        %s325 = smul.addr %s324, 4
        %s326 = scalar_lea.vmem %s5, %s325
        %p327 = pneg %p182
        %p328 = pneg %p179
        %p329 = pneg %p208
        %p330 = pneg %p205
        %s331 = smul.u32 2, %s23
        %p332 = scmp.lt.s32.totalorder %s24, 1
        %s333 = scalar_select %p332, %s24, 1
        %s334 = smul.addr %s333, 4
        %s335 = smul.addr %s334, 4
        %s336 = scalar_lea.vmem %s1, %s335
        %p337 = scmp.lt.s32.totalorder %s24, 1
        %s338 = scalar_select %p337, %s24, 1
        %s339 = smul.addr %s338, 4
        %s340 = smul.addr %s339, 4
        %s341 = scalar_lea.vmem %s2, %s340
        %p342 = scmp.lt.s32.totalorder %s24, 1
        %s343 = scalar_select %p342, %s24, 1
        %s344 = smul.addr %s343, 4
        %s345 = scalar_lea.vmem %s3, %s344
        %p346 = scmp.lt.s32.totalorder %s24, 1
        %s347 = scalar_select %p346, %s24, 1
        %s348 = smul.addr %s347, 4
        %s349 = smul.addr %s348, 4
        %s350 = scalar_lea.vmem %s4, %s349
        %p351 = scmp.lt.s32.totalorder %s24, 1
        %s352 = scalar_select %p351, %s24, 1
        %s353 = smul.addr %s352, 16
        %s354 = smul.addr %s353, 4
        %s355 = scalar_lea.vmem %s5, %s354
        %s356 = smul.u32 2, %s23
        %p358 = scmp.eq.s32.totalorder %s24, 0
        // Predicated region
        $region49: #{tpu_custom_call.1} parent=43 // pred_check
          %p359 = pneg %p358
        $region50: #{tpu_custom_call.1} parent=43 // pred_check_branch
          %361 = sbr.rel (%p359) target = $region52
        $region51: #{tpu_custom_call.1} parent=43 // pred_region
          %v362 = vld [vmem:[#allocation2] sm:$0xff]
          %v363 = vld [vmem:[#allocation2 + $0x8] sm:$0xff]
          %vm364 = vcmask 261120
          %365 = vst.msk [vmem:[#allocation5] sm:$0xff] %vm364, %v362
          %366 = vst.msk [vmem:[#allocation5 + $0x8] sm:$0xff] %vm364, %v363
        $region52: #{tpu_custom_call.1} parent=43 // pred_fallthru
          _
        %v367 = vld [vmem:[#allocation5] sm:$0xff]
        %v368 = vld [vmem:[#allocation5 + $0x8] sm:$0xff]
        %v369 = vpack.c.bf16 %v368, %v367
        %v370 = vld [vmem:[%s336] sm:$0xf]
        %v371 = vld [vmem:[%s336 + $0x4] sm:$0xf]
        %v372 = vld [vmem:[%s336 + $0x8] sm:$0xf]
        %v373 = vld [vmem:[%s336 + $0xc] sm:$0xf]
        %v378 = vunpack.c.l.b16 %v370
        %v379 = vunpack.c.l.b16 %v371
        %v380 = vunpack.c.l.b16 %v372
        %v381 = vunpack.c.l.b16 %v373
        %v382 = vpack.c.b16 %v379, %v378
        %v383 = vpack.c.b16 %v381, %v380
        %vm386 = vcmask 261120
        %v388 = vsel %vm386, %v369, 0
        %390 = vmatprep.subr.bf16.mxu0 0
        %391 = vmatpush1.bf16.msra.mxu0 %v382
        %392 = vmatprep.subr.bf16.mxu0 0
        %393 = vmatpush1.bf16.msra.mxu0 %v383
        %394 = vmatprep.subr.bf16.mxu0 0
        %395 = vmatpush1.bf16.msra.mxu0 0
        %396 = vmatprep.subr.bf16.mxu0 0
        %397 = vmatpush1.bf16.msra.mxu0 0
        %398 = vmatprep.subr.bf16.mxu0 0
        %399 = vmatpush1.bf16.msra.mxu0 0
        %400 = vmatprep.subr.bf16.mxu0 0
        %401 = vmatpush1.bf16.msra.mxu0 0
        %402 = vmatprep.subr.bf16.mxu0 0
        %403 = vmatpush1.bf16.msra.mxu0 0
        %404 = vmatprep.subr.bf16.mxu0 0
        %405 = vmatpush1.bf16.msra.mxu0 0
        %406 = vmatprep.subr.bf16.mxu0 0
        %407 = vmatpush1.bf16.msra.mxu0 0
        %408 = vmatprep.subr.bf16.mxu0 0
        %409 = vmatpush1.bf16.msra.mxu0 0
        %410 = vmatprep.subr.bf16.mxu0 0
        %411 = vmatpush1.bf16.msra.mxu0 0
        %412 = vmatprep.subr.bf16.mxu0 0
        %413 = vmatpush1.bf16.msra.mxu0 0
        %414 = vmatprep.subr.bf16.mxu0 0
        %415 = vmatpush1.bf16.msra.mxu0 0
        %416 = vmatprep.subr.bf16.mxu0 0
        %417 = vmatpush1.bf16.msra.mxu0 0
        %418 = vmatprep.subr.bf16.mxu0 0
        %419 = vmatpush1.bf16.msra.mxu0 0
        %420 = vmatprep.subr.bf16.mxu0 0
        %421 = vmatpush1.bf16.msra.mxu0 0
        %422 = vmatprep.mubr.bf16.mxu0 0
        %423 = vmatmul.mubr.bf16.gmra.mrb[0].mxu0 %v388
        %v424 = vpop.f32.mrb[0].mxu0
        %v425 = vadd.f32 0.0, %v424
        %v426 = vpop.f32.mrb[0].mxu0
        %v427 = vpop.f32.mrb[0].mxu0
        %v428 = vadd.f32 0.0, %v427
        %v429 = vpop.f32.mrb[0].mxu0
        %430 = vdwg.mxu0
        %v431 = vmul.f32 %v425, 0.35355338
        %v432 = vmul.f32 %v428, 0.35355338
        %v433 = vpack.c.bf16 %v432, %v431
        %v435 = vunpack.c.l.b16 %v433
        %v436 = vunpack.c.h.b16 %v433
        %v437 = vpack.c.b16 %v435, %v435
        %v438 = vpack.c.b16 %v436, %v436
        %v439 = vpack.c.bf16 %v428, %v425
        %v441 = vunpack.c.l.b16 %v439
        %v442 = vunpack.c.h.b16 %v439
        %v443 = vpack.c.b16 %v441, %v441
        %444 = vrot.lane.b32.xlu0 %v443, 96
        %v445 = vpop.permute.xlu0 %444
        %vm446 = vcmask 64512
        %v448 = vsel %vm446, %v437, 0
        %v451 = vsel %vm446, %v445, 0
        %453 = vmatprep.subr.bf16.mxu0 0
        %454 = vmatpush1.bf16.xpose.msra.mxu0 %v451
        %455 = vmatprep.subr.bf16.mxu0 0
        %456 = vmatpush1.bf16.xpose.msra.mxu0 0
        %457 = vmatprep.subr.bf16.mxu0 0
        %458 = vmatpush1.bf16.xpose.msra.mxu0 0
        %459 = vmatprep.subr.bf16.mxu0 0
        %460 = vmatpush1.bf16.xpose.msra.mxu0 0
        %461 = vmatprep.subr.bf16.mxu0 0
        %462 = vmatpush1.bf16.xpose.msra.mxu0 0
        %463 = vmatprep.subr.bf16.mxu0 0
        %464 = vmatpush1.bf16.xpose.msra.mxu0 0
        %465 = vmatprep.subr.bf16.mxu0 0
        %466 = vmatpush1.bf16.xpose.msra.mxu0 0
        %467 = vmatprep.subr.bf16.mxu0 0
        %468 = vmatpush1.bf16.xpose.msra.mxu0 0
        %469 = vmatprep.subr.bf16.mxu0 0
        %470 = vmatpush1.bf16.xpose.msra.mxu0 0
        %471 = vmatprep.subr.bf16.mxu0 0
        %472 = vmatpush1.bf16.xpose.msra.mxu0 0
        %473 = vmatprep.subr.bf16.mxu0 0
        %474 = vmatpush1.bf16.xpose.msra.mxu0 0
        %475 = vmatprep.subr.bf16.mxu0 0
        %476 = vmatpush1.bf16.xpose.msra.mxu0 0
        %477 = vmatprep.subr.bf16.mxu0 0
        %478 = vmatpush1.bf16.xpose.msra.mxu0 0
        %479 = vmatprep.subr.bf16.mxu0 0
        %480 = vmatpush1.bf16.xpose.msra.mxu0 0
        %481 = vmatprep.subr.bf16.mxu0 0
        %482 = vmatpush1.bf16.xpose.msra.mxu0 0
        %483 = vmatprep.subr.bf16.mxu0 0
        %484 = vmatpush1.bf16.xpose.msra.mxu0 0
        %485 = vmatprep.mubr.bf16.mxu0 0
        %486 = vmatmul.mubr.bf16.gmra.mrb[0].mxu0 %v448
        %v487 = vpop.f32.mrb[0].mxu0
        %v488 = vadd.f32 0.0, %v487
        %v489 = vpop.f32.mrb[0].mxu0
        %v490 = vpop.f32.mrb[0].mxu0
        %v491 = vpop.f32.mrb[0].mxu0
        %492 = vdwg.mxu0
        %v493 = vpack.c.b16 %v442, %v442
        %494 = vrot.lane.b32.xlu0 %v493, 96
        %v495 = vpop.permute.xlu0 %494
        %v497 = vsel %vm446, %v438, 0
        %v500 = vsel %vm446, %v495, 0
        %502 = vmatprep.subr.bf16.mxu0 0
        %503 = vmatpush1.bf16.xpose.msra.mxu0 %v500
        %504 = vmatprep.subr.bf16.mxu0 0
        %505 = vmatpush1.bf16.xpose.msra.mxu0 0
        %506 = vmatprep.subr.bf16.mxu0 0
        %507 = vmatpush1.bf16.xpose.msra.mxu0 0
        %508 = vmatprep.subr.bf16.mxu0 0
        %509 = vmatpush1.bf16.xpose.msra.mxu0 0
        %510 = vmatprep.subr.bf16.mxu0 0
        %511 = vmatpush1.bf16.xpose.msra.mxu0 0
        %512 = vmatprep.subr.bf16.mxu0 0
        %513 = vmatpush1.bf16.xpose.msra.mxu0 0
        %514 = vmatprep.subr.bf16.mxu0 0
        %515 = vmatpush1.bf16.xpose.msra.mxu0 0
        %516 = vmatprep.subr.bf16.mxu0 0
        %517 = vmatpush1.bf16.xpose.msra.mxu0 0
        %518 = vmatprep.subr.bf16.mxu0 0
        %519 = vmatpush1.bf16.xpose.msra.mxu0 0
        %520 = vmatprep.subr.bf16.mxu0 0
        %521 = vmatpush1.bf16.xpose.msra.mxu0 0
        %522 = vmatprep.subr.bf16.mxu0 0
        %523 = vmatpush1.bf16.xpose.msra.mxu0 0
        %524 = vmatprep.subr.bf16.mxu0 0
        %525 = vmatpush1.bf16.xpose.msra.mxu0 0
        %526 = vmatprep.subr.bf16.mxu0 0
        %527 = vmatpush1.bf16.xpose.msra.mxu0 0
        %528 = vmatprep.subr.bf16.mxu0 0
        %529 = vmatpush1.bf16.xpose.msra.mxu0 0
        %530 = vmatprep.subr.bf16.mxu0 0
        %531 = vmatpush1.bf16.xpose.msra.mxu0 0
        %532 = vmatprep.subr.bf16.mxu0 0
        %533 = vmatpush1.bf16.xpose.msra.mxu0 0
        %534 = vmatprep.mubr.bf16.mxu0 0
        %535 = vmatmul.mubr.bf16.gmra.mrb[0].mxu0 %v497
        %v536 = vpop.f32.mrb[0].mxu0
        %v537 = vadd.f32 0.0, %v536
        %v538 = vpop.f32.mrb[0].mxu0
        %v539 = vpop.f32.mrb[0].mxu0
        %v540 = vpop.f32.mrb[0].mxu0
        %541 = vdwg.mxu0
        %v542 = vsel %vm446, %v488, -inf
        %543 = vmax.xlane.f32.xlu0 %v542
        %v544 = vpop.xlane.xlu0 %543
        %v545 = vsel %vm446, %v537, -inf
        %546 = vmax.xlane.f32.xlu0 %v545
        %v547 = vpop.xlane.xlu0 %546
        %v548 = vsub.f32 %v488, %v544
        %v549 = vsub.f32 %v537, %v547
        %v550 = vmul.f32 %v548, 1.442695
        %v551 = vpow.pop %v550
        %v552 = vmul.f32 %v549, 1.442695
        %v553 = vpow.pop %v552
        %v554 = vsel %vm446, %v551, 0.0
        %555 = vadd.xlane.f32.xlu0 %v554
        %v556 = vpop.xlane.xlu0 %555
        %v557 = vsel %vm446, %v553, 0.0
        %558 = vadd.xlane.f32.xlu0 %v557
        %v559 = vpop.xlane.xlu0 %558
        %v560 = vrcp.pop %v556
        %v561 = vrcp.pop %v559
        %v562 = vmul.f32 %v551, %v560
        %v563 = vmul.f32 %v553, %v561
        %v564 = vpack.c.bf16 %v562, %v562
        %v565 = vpack.c.bf16 %v563, %v563
        %566 = vrot.lane.b32.xlu0 %v443, 64
        %v567 = vpop.permute.xlu0 %566
        %v569 = vsel %vm446, %v564, 0
        %vm571 = vcmask 1043456
        %v573 = vsel %vm571, %v567, 0
        %575 = vmatprep.subr.bf16.mxu0 0
        %576 = vmatpush1.bf16.msra.mxu0 %v573
        %577 = vmatprep.subr.bf16.mxu0 0
        %578 = vmatpush1.bf16.msra.mxu0 0
        %579 = vmatprep.subr.bf16.mxu0 0
        %580 = vmatpush1.bf16.msra.mxu0 0
        %581 = vmatprep.subr.bf16.mxu0 0
        %582 = vmatpush1.bf16.msra.mxu0 0
        %583 = vmatprep.subr.bf16.mxu0 0
        %584 = vmatpush1.bf16.msra.mxu0 0
        %585 = vmatprep.subr.bf16.mxu0 0
        %586 = vmatpush1.bf16.msra.mxu0 0
        %587 = vmatprep.subr.bf16.mxu0 0
        %588 = vmatpush1.bf16.msra.mxu0 0
        %589 = vmatprep.subr.bf16.mxu0 0
        %590 = vmatpush1.bf16.msra.mxu0 0
        %591 = vmatprep.subr.bf16.mxu0 0
        %592 = vmatpush1.bf16.msra.mxu0 0
        %593 = vmatprep.subr.bf16.mxu0 0
        %594 = vmatpush1.bf16.msra.mxu0 0
        %595 = vmatprep.subr.bf16.mxu0 0
        %596 = vmatpush1.bf16.msra.mxu0 0
        %597 = vmatprep.subr.bf16.mxu0 0
        %598 = vmatpush1.bf16.msra.mxu0 0
        %599 = vmatprep.subr.bf16.mxu0 0
        %600 = vmatpush1.bf16.msra.mxu0 0
        %601 = vmatprep.subr.bf16.mxu0 0
        %602 = vmatpush1.bf16.msra.mxu0 0
        %603 = vmatprep.subr.bf16.mxu0 0
        %604 = vmatpush1.bf16.msra.mxu0 0
        %605 = vmatprep.subr.bf16.mxu0 0
        %606 = vmatpush1.bf16.msra.mxu0 0
        %607 = vmatprep.mubr.bf16.mxu0 0
        %608 = vmatmul.mubr.bf16.gmra.mrb[0].mxu0 %v569
        %v609 = vpop.f32.mrb[0].mxu0
        %v610 = vadd.f32 0.0, %v609
        %v611 = vpop.f32.mrb[0].mxu0
        %v612 = vpop.f32.mrb[0].mxu0
        %v613 = vpop.f32.mrb[0].mxu0
        %614 = vdwg.mxu0
        %615 = vrot.lane.b32.xlu0 %v493, 64
        %v616 = vpop.permute.xlu0 %615
        %v618 = vsel %vm446, %v565, 0
        %v621 = vsel %vm571, %v616, 0
        %623 = vmatprep.subr.bf16.mxu0 0
        %624 = vmatpush1.bf16.msra.mxu0 %v621
        %625 = vmatprep.subr.bf16.mxu0 0
        %626 = vmatpush1.bf16.msra.mxu0 0
        %627 = vmatprep.subr.bf16.mxu0 0
        %628 = vmatpush1.bf16.msra.mxu0 0
        %629 = vmatprep.subr.bf16.mxu0 0
        %630 = vmatpush1.bf16.msra.mxu0 0
        %631 = vmatprep.subr.bf16.mxu0 0
        %632 = vmatpush1.bf16.msra.mxu0 0
        %633 = vmatprep.subr.bf16.mxu0 0
        %634 = vmatpush1.bf16.msra.mxu0 0
        %635 = vmatprep.subr.bf16.mxu0 0
        %636 = vmatpush1.bf16.msra.mxu0 0
        %637 = vmatprep.subr.bf16.mxu0 0
        %638 = vmatpush1.bf16.msra.mxu0 0
        %639 = vmatprep.subr.bf16.mxu0 0
        %640 = vmatpush1.bf16.msra.mxu0 0
        %641 = vmatprep.subr.bf16.mxu0 0
        %642 = vmatpush1.bf16.msra.mxu0 0
        %643 = vmatprep.subr.bf16.mxu0 0
        %644 = vmatpush1.bf16.msra.mxu0 0
        %645 = vmatprep.subr.bf16.mxu0 0
        %646 = vmatpush1.bf16.msra.mxu0 0
        %647 = vmatprep.subr.bf16.mxu0 0
        %648 = vmatpush1.bf16.msra.mxu0 0
        %649 = vmatprep.subr.bf16.mxu0 0
        %650 = vmatpush1.bf16.msra.mxu0 0
        %651 = vmatprep.subr.bf16.mxu0 0
        %652 = vmatpush1.bf16.msra.mxu0 0
        %653 = vmatprep.subr.bf16.mxu0 0
        %654 = vmatpush1.bf16.msra.mxu0 0
        %655 = vmatprep.mubr.bf16.mxu0 0
        %656 = vmatmul.mubr.bf16.gmra.mrb[0].mxu0 %v618
        %v657 = vpop.f32.mrb[0].mxu0
        %v658 = vadd.f32 0.0, %v657
        %v659 = vpop.f32.mrb[0].mxu0
        %v660 = vpop.f32.mrb[0].mxu0
        %v661 = vpop.f32.mrb[0].mxu0
        %662 = vdwg.mxu0
        %663 = vrot.lane.b32.xlu0 %v437, 120
        %v664 = vpop.permute.xlu0 %663
        %665 = vrot.lane.b32.xlu0 %v443, 88
        %v666 = vpop.permute.xlu0 %665
        %v668 = vsel %vm446, %v664, 0
        %v671 = vsel %vm446, %v666, 0
        %673 = vmatprep.subr.bf16.mxu0 0
        %674 = vmatpush1.bf16.xpose.msra.mxu0 %v671
        %675 = vmatprep.subr.bf16.mxu0 0
        %676 = vmatpush1.bf16.xpose.msra.mxu0 0
        %677 = vmatprep.subr.bf16.mxu0 0
        %678 = vmatpush1.bf16.xpose.msra.mxu0 0
        %679 = vmatprep.subr.bf16.mxu0 0
        %680 = vmatpush1.bf16.xpose.msra.mxu0 0
        %681 = vmatprep.subr.bf16.mxu0 0
        %682 = vmatpush1.bf16.xpose.msra.mxu0 0
        %683 = vmatprep.subr.bf16.mxu0 0
        %684 = vmatpush1.bf16.xpose.msra.mxu0 0
        %685 = vmatprep.subr.bf16.mxu0 0
        %686 = vmatpush1.bf16.xpose.msra.mxu0 0
        %687 = vmatprep.subr.bf16.mxu0 0
        %688 = vmatpush1.bf16.xpose.msra.mxu0 0
        %689 = vmatprep.subr.bf16.mxu0 0
        %690 = vmatpush1.bf16.xpose.msra.mxu0 0
        %691 = vmatprep.subr.bf16.mxu0 0
        %692 = vmatpush1.bf16.xpose.msra.mxu0 0
        %693 = vmatprep.subr.bf16.mxu0 0
        %694 = vmatpush1.bf16.xpose.msra.mxu0 0
        %695 = vmatprep.subr.bf16.mxu0 0
        %696 = vmatpush1.bf16.xpose.msra.mxu0 0
        %697 = vmatprep.subr.bf16.mxu0 0
        %698 = vmatpush1.bf16.xpose.msra.mxu0 0
        %699 = vmatprep.subr.bf16.mxu0 0
        %700 = vmatpush1.bf16.xpose.msra.mxu0 0
        %701 = vmatprep.subr.bf16.mxu0 0
        %702 = vmatpush1.bf16.xpose.msra.mxu0 0
        %703 = vmatprep.subr.bf16.mxu0 0
        %704 = vmatpush1.bf16.xpose.msra.mxu0 0
        %705 = vmatprep.mubr.bf16.mxu0 0
        %706 = vmatmul.mubr.bf16.gmra.mrb[0].mxu0 %v668
        %v707 = vpop.f32.mrb[0].mxu0
        %v708 = vadd.f32 0.0, %v707
        %v709 = vpop.f32.mrb[0].mxu0
        %v710 = vpop.f32.mrb[0].mxu0
        %v711 = vpop.f32.mrb[0].mxu0
        %712 = vdwg.mxu0
        %713 = vrot.lane.b32.xlu0 %v438, 120
        %v714 = vpop.permute.xlu0 %713
        %715 = vrot.lane.b32.xlu0 %v493, 88
        %v716 = vpop.permute.xlu0 %715
        %v718 = vsel %vm446, %v714, 0
        %v721 = vsel %vm446, %v716, 0
        %723 = vmatprep.subr.bf16.mxu0 0
        %724 = vmatpush1.bf16.xpose.msra.mxu0 %v721
        %725 = vmatprep.subr.bf16.mxu0 0
        %726 = vmatpush1.bf16.xpose.msra.mxu0 0
        %727 = vmatprep.subr.bf16.mxu0 0
        %728 = vmatpush1.bf16.xpose.msra.mxu0 0
        %729 = vmatprep.subr.bf16.mxu0 0
        %730 = vmatpush1.bf16.xpose.msra.mxu0 0
        %731 = vmatprep.subr.bf16.mxu0 0
        %732 = vmatpush1.bf16.xpose.msra.mxu0 0
        %733 = vmatprep.subr.bf16.mxu0 0
        %734 = vmatpush1.bf16.xpose.msra.mxu0 0
        %735 = vmatprep.subr.bf16.mxu0 0
        %736 = vmatpush1.bf16.xpose.msra.mxu0 0
        %737 = vmatprep.subr.bf16.mxu0 0
        %738 = vmatpush1.bf16.xpose.msra.mxu0 0
        %739 = vmatprep.subr.bf16.mxu0 0
        %740 = vmatpush1.bf16.xpose.msra.mxu0 0
        %741 = vmatprep.subr.bf16.mxu0 0
        %742 = vmatpush1.bf16.xpose.msra.mxu0 0
        %743 = vmatprep.subr.bf16.mxu0 0
        %744 = vmatpush1.bf16.xpose.msra.mxu0 0
        %745 = vmatprep.subr.bf16.mxu0 0
        %746 = vmatpush1.bf16.xpose.msra.mxu0 0
        %747 = vmatprep.subr.bf16.mxu0 0
        %748 = vmatpush1.bf16.xpose.msra.mxu0 0
        %749 = vmatprep.subr.bf16.mxu0 0
        %750 = vmatpush1.bf16.xpose.msra.mxu0 0
        %751 = vmatprep.subr.bf16.mxu0 0
        %752 = vmatpush1.bf16.xpose.msra.mxu0 0
        %753 = vmatprep.subr.bf16.mxu0 0
        %754 = vmatpush1.bf16.xpose.msra.mxu0 0
        %755 = vmatprep.mubr.bf16.mxu0 0
        %756 = vmatmul.mubr.bf16.gmra.mrb[0].mxu0 %v718
        %v757 = vpop.f32.mrb[0].mxu0
        %v758 = vadd.f32 0.0, %v757
        %v759 = vpop.f32.mrb[0].mxu0
        %v760 = vpop.f32.mrb[0].mxu0
        %v761 = vpop.f32.mrb[0].mxu0
        %762 = vdwg.mxu0
        %v763 = vsel %vm446, %v708, -inf
        %764 = vmax.xlane.f32.xlu0 %v763
        %v765 = vpop.xlane.xlu0 %764
        %v766 = vsel %vm446, %v758, -inf
        %767 = vmax.xlane.f32.xlu0 %v766
        %v768 = vpop.xlane.xlu0 %767
        %v769 = vsub.f32 %v708, %v765
        %v770 = vsub.f32 %v758, %v768
        %v771 = vmul.f32 %v769, 1.442695
        %v772 = vpow.pop %v771
        %v773 = vmul.f32 %v770, 1.442695
        %v774 = vpow.pop %v773
        %v775 = vsel %vm446, %v772, 0.0
        %776 = vadd.xlane.f32.xlu0 %v775
        %v777 = vpop.xlane.xlu0 %776
        %v778 = vsel %vm446, %v774, 0.0
        %779 = vadd.xlane.f32.xlu0 %v778
        %v780 = vpop.xlane.xlu0 %779
        %v781 = vrcp.pop %v777
        %v782 = vrcp.pop %v780
        %v783 = vmul.f32 %v772, %v781
        %v784 = vmul.f32 %v774, %v782
        %v785 = vpack.c.bf16 %v783, %v783
        %v786 = vpack.c.bf16 %v784, %v784
        %787 = vrot.lane.b32.xlu0 %v443, 56
        %v788 = vpop.permute.xlu0 %787
        %v790 = vsel %vm446, %v785, 0
        %v793 = vsel %vm571, %v788, 0
        %795 = vmatprep.subr.bf16.mxu0 0
        %796 = vmatpush1.bf16.msra.mxu0 %v793
        %797 = vmatprep.subr.bf16.mxu0 0
        %798 = vmatpush1.bf16.msra.mxu0 0
        %799 = vmatprep.subr.bf16.mxu0 0
        %800 = vmatpush1.bf16.msra.mxu0 0
        %801 = vmatprep.subr.bf16.mxu0 0
        %802 = vmatpush1.bf16.msra.mxu0 0
        %803 = vmatprep.subr.bf16.mxu0 0
        %804 = vmatpush1.bf16.msra.mxu0 0
        %805 = vmatprep.subr.bf16.mxu0 0
        %806 = vmatpush1.bf16.msra.mxu0 0
        %807 = vmatprep.subr.bf16.mxu0 0
        %808 = vmatpush1.bf16.msra.mxu0 0
        %809 = vmatprep.subr.bf16.mxu0 0
        %810 = vmatpush1.bf16.msra.mxu0 0
        %811 = vmatprep.subr.bf16.mxu0 0
        %812 = vmatpush1.bf16.msra.mxu0 0
        %813 = vmatprep.subr.bf16.mxu0 0
        %814 = vmatpush1.bf16.msra.mxu0 0
        %815 = vmatprep.subr.bf16.mxu0 0
        %816 = vmatpush1.bf16.msra.mxu0 0
        %817 = vmatprep.subr.bf16.mxu0 0
        %818 = vmatpush1.bf16.msra.mxu0 0
        %819 = vmatprep.subr.bf16.mxu0 0
        %820 = vmatpush1.bf16.msra.mxu0 0
        %821 = vmatprep.subr.bf16.mxu0 0
        %822 = vmatpush1.bf16.msra.mxu0 0
        %823 = vmatprep.subr.bf16.mxu0 0
        %824 = vmatpush1.bf16.msra.mxu0 0
        %825 = vmatprep.subr.bf16.mxu0 0
        %826 = vmatpush1.bf16.msra.mxu0 0
        %827 = vmatprep.mubr.bf16.mxu0 0
        %828 = vmatmul.mubr.bf16.gmra.mrb[0].mxu0 %v790
        %v829 = vpop.f32.mrb[0].mxu0
        %v830 = vadd.f32 0.0, %v829
        %v831 = vpop.f32.mrb[0].mxu0
        %v832 = vpop.f32.mrb[0].mxu0
        %v833 = vpop.f32.mrb[0].mxu0
        %834 = vdwg.mxu0
        %835 = vrot.lane.b32.xlu0 %v493, 56
        %v836 = vpop.permute.xlu0 %835
        %v838 = vsel %vm446, %v786, 0
        %v841 = vsel %vm571, %v836, 0
        %843 = vmatprep.subr.bf16.mxu0 0
        %844 = vmatpush1.bf16.msra.mxu0 %v841
        %845 = vmatprep.subr.bf16.mxu0 0
        %846 = vmatpush1.bf16.msra.mxu0 0
        %847 = vmatprep.subr.bf16.mxu0 0
        %848 = vmatpush1.bf16.msra.mxu0 0
        %849 = vmatprep.subr.bf16.mxu0 0
        %850 = vmatpush1.bf16.msra.mxu0 0
        %851 = vmatprep.subr.bf16.mxu0 0
        %852 = vmatpush1.bf16.msra.mxu0 0
        %853 = vmatprep.subr.bf16.mxu0 0
        %854 = vmatpush1.bf16.msra.mxu0 0
        %855 = vmatprep.subr.bf16.mxu0 0
        %856 = vmatpush1.bf16.msra.mxu0 0
        %857 = vmatprep.subr.bf16.mxu0 0
        %858 = vmatpush1.bf16.msra.mxu0 0
        %859 = vmatprep.subr.bf16.mxu0 0
        %860 = vmatpush1.bf16.msra.mxu0 0
        %861 = vmatprep.subr.bf16.mxu0 0
        %862 = vmatpush1.bf16.msra.mxu0 0
        %863 = vmatprep.subr.bf16.mxu0 0
        %864 = vmatpush1.bf16.msra.mxu0 0
        %865 = vmatprep.subr.bf16.mxu0 0
        %866 = vmatpush1.bf16.msra.mxu0 0
        %867 = vmatprep.subr.bf16.mxu0 0
        %868 = vmatpush1.bf16.msra.mxu0 0
        %869 = vmatprep.subr.bf16.mxu0 0
        %870 = vmatpush1.bf16.msra.mxu0 0
        %871 = vmatprep.subr.bf16.mxu0 0
        %872 = vmatpush1.bf16.msra.mxu0 0
        %873 = vmatprep.subr.bf16.mxu0 0
        %874 = vmatpush1.bf16.msra.mxu0 0
        %875 = vmatprep.mubr.bf16.mxu0 0
        %876 = vmatmul.mubr.bf16.gmra.mrb[0].mxu0 %v838
        %v877 = vpop.f32.mrb[0].mxu0
        %v878 = vadd.f32 0.0, %v877
        %v879 = vpop.f32.mrb[0].mxu0
        %v880 = vpop.f32.mrb[0].mxu0
        %v881 = vpop.f32.mrb[0].mxu0
        %882 = vdwg.mxu0
        %883 = vrot.lane.b32.xlu0 %v437, 112
        %v884 = vpop.permute.xlu0 %883
        %885 = vrot.lane.b32.xlu0 %v443, 80
        %v886 = vpop.permute.xlu0 %885
        %v888 = vsel %vm446, %v884, 0
        %v891 = vsel %vm446, %v886, 0
        %893 = vmatprep.subr.bf16.mxu0 0
        %894 = vmatpush1.bf16.xpose.msra.mxu0 %v891
        %895 = vmatprep.subr.bf16.mxu0 0
        %896 = vmatpush1.bf16.xpose.msra.mxu0 0
        %897 = vmatprep.subr.bf16.mxu0 0
        %898 = vmatpush1.bf16.xpose.msra.mxu0 0
        %899 = vmatprep.subr.bf16.mxu0 0
        %900 = vmatpush1.bf16.xpose.msra.mxu0 0
        %901 = vmatprep.subr.bf16.mxu0 0
        %902 = vmatpush1.bf16.xpose.msra.mxu0 0
        %903 = vmatprep.subr.bf16.mxu0 0
        %904 = vmatpush1.bf16.xpose.msra.mxu0 0
        %905 = vmatprep.subr.bf16.mxu0 0
        %906 = vmatpush1.bf16.xpose.msra.mxu0 0
        %907 = vmatprep.subr.bf16.mxu0 0
        %908 = vmatpush1.bf16.xpose.msra.mxu0 0
        %909 = vmatprep.subr.bf16.mxu0 0
        %910 = vmatpush1.bf16.xpose.msra.mxu0 0
        %911 = vmatprep.subr.bf16.mxu0 0
        %912 = vmatpush1.bf16.xpose.msra.mxu0 0
        %913 = vmatprep.subr.bf16.mxu0 0
        %914 = vmatpush1.bf16.xpose.msra.mxu0 0
        %915 = vmatprep.subr.bf16.mxu0 0
        %916 = vmatpush1.bf16.xpose.msra.mxu0 0
        %917 = vmatprep.subr.bf16.mxu0 0
        %918 = vmatpush1.bf16.xpose.msra.mxu0 0
        %919 = vmatprep.subr.bf16.mxu0 0
        %920 = vmatpush1.bf16.xpose.msra.mxu0 0
        %921 = vmatprep.subr.bf16.mxu0 0
        %922 = vmatpush1.bf16.xpose.msra.mxu0 0
        %923 = vmatprep.subr.bf16.mxu0 0
        %924 = vmatpush1.bf16.xpose.msra.mxu0 0
        %925 = vmatprep.mubr.bf16.mxu0 0
        %926 = vmatmul.mubr.bf16.gmra.mrb[0].mxu0 %v888
        %v927 = vpop.f32.mrb[0].mxu0
        %v928 = vadd.f32 0.0, %v927
        %v929 = vpop.f32.mrb[0].mxu0
        %v930 = vpop.f32.mrb[0].mxu0
        %v931 = vpop.f32.mrb[0].mxu0
        %932 = vdwg.mxu0
        %933 = vrot.lane.b32.xlu0 %v438, 112
        %v934 = vpop.permute.xlu0 %933
        %935 = vrot.lane.b32.xlu0 %v493, 80
        %v936 = vpop.permute.xlu0 %935
        %v938 = vsel %vm446, %v934, 0
        %v941 = vsel %vm446, %v936, 0
        %943 = vmatprep.subr.bf16.mxu0 0
        %944 = vmatpush1.bf16.xpose.msra.mxu0 %v941
        %945 = vmatprep.subr.bf16.mxu0 0
        %946 = vmatpush1.bf16.xpose.msra.mxu0 0
        %947 = vmatprep.subr.bf16.mxu0 0
        %948 = vmatpush1.bf16.xpose.msra.mxu0 0
        %949 = vmatprep.subr.bf16.mxu0 0
        %950 = vmatpush1.bf16.xpose.msra.mxu0 0
        %951 = vmatprep.subr.bf16.mxu0 0
        %952 = vmatpush1.bf16.xpose.msra.mxu0 0
        %953 = vmatprep.subr.bf16.mxu0 0
        %954 = vmatpush1.bf16.xpose.msra.mxu0 0
        %955 = vmatprep.subr.bf16.mxu0 0
        %956 = vmatpush1.bf16.xpose.msra.mxu0 0
        %957 = vmatprep.subr.bf16.mxu0 0
        %958 = vmatpush1.bf16.xpose.msra.mxu0 0
        %959 = vmatprep.subr.bf16.mxu0 0
        %960 = vmatpush1.bf16.xpose.msra.mxu0 0
        %961 = vmatprep.subr.bf16.mxu0 0
        %962 = vmatpush1.bf16.xpose.msra.mxu0 0
        %963 = vmatprep.subr.bf16.mxu0 0
        %964 = vmatpush1.bf16.xpose.msra.mxu0 0
        %965 = vmatprep.subr.bf16.mxu0 0
        %966 = vmatpush1.bf16.xpose.msra.mxu0 0
        %967 = vmatprep.subr.bf16.mxu0 0
        %968 = vmatpush1.bf16.xpose.msra.mxu0 0
        %969 = vmatprep.subr.bf16.mxu0 0
        %970 = vmatpush1.bf16.xpose.msra.mxu0 0
        %971 = vmatprep.subr.bf16.mxu0 0
        %972 = vmatpush1.bf16.xpose.msra.mxu0 0
        %973 = vmatprep.subr.bf16.mxu0 0
        %974 = vmatpush1.bf16.xpose.msra.mxu0 0
        %975 = vmatprep.mubr.bf16.mxu0 0
        %976 = vmatmul.mubr.bf16.gmra.mrb[0].mxu0 %v938
        %v977 = vpop.f32.mrb[0].mxu0
        %v978 = vadd.f32 0.0, %v977
        %v979 = vpop.f32.mrb[0].mxu0
        %v980 = vpop.f32.mrb[0].mxu0
        %v981 = vpop.f32.mrb[0].mxu0
        %982 = vdwg.mxu0
        %v983 = vsel %vm446, %v928, -inf
        %984 = vmax.xlane.f32.xlu0 %v983
        %v985 = vpop.xlane.xlu0 %984
        %v986 = vsel %vm446, %v978, -inf
        %987 = vmax.xlane.f32.xlu0 %v986
        %v988 = vpop.xlane.xlu0 %987
        %v989 = vsub.f32 %v928, %v985
        %v990 = vsub.f32 %v978, %v988
        %v991 = vmul.f32 %v989, 1.442695
        %v992 = vpow.pop %v991
        %v993 = vmul.f32 %v990, 1.442695
        %v994 = vpow.pop %v993
        %v995 = vsel %vm446, %v992, 0.0
        %996 = vadd.xlane.f32.xlu0 %v995
        %v997 = vpop.xlane.xlu0 %996
        %v998 = vsel %vm446, %v994, 0.0
        %999 = vadd.xlane.f32.xlu0 %v998
        %v1000 = vpop.xlane.xlu0 %999
        %v1001 = vrcp.pop %v997
        %v1002 = vrcp.pop %v1000
        %v1003 = vmul.f32 %v992, %v1001
        %v1004 = vmul.f32 %v994, %v1002
        %v1005 = vpack.c.bf16 %v1003, %v1003
        %v1006 = vpack.c.bf16 %v1004, %v1004
        %1007 = vrot.lane.b32.xlu0 %v443, 48
        %v1008 = vpop.permute.xlu0 %1007
        %v1010 = vsel %vm446, %v1005, 0
        %v1013 = vsel %vm571, %v1008, 0
        %1015 = vmatprep.subr.bf16.mxu0 0
        %1016 = vmatpush1.bf16.msra.mxu0 %v1013
        %1017 = vmatprep.subr.bf16.mxu0 0
        %1018 = vmatpush1.bf16.msra.mxu0 0
        %1019 = vmatprep.subr.bf16.mxu0 0
        %1020 = vmatpush1.bf16.msra.mxu0 0
        %1021 = vmatprep.subr.bf16.mxu0 0
        %1022 = vmatpush1.bf16.msra.mxu0 0
        %1023 = vmatprep.subr.bf16.mxu0 0
        %1024 = vmatpush1.bf16.msra.mxu0 0
        %1025 = vmatprep.subr.bf16.mxu0 0
        %1026 = vmatpush1.bf16.msra.mxu0 0
        %1027 = vmatprep.subr.bf16.mxu0 0
        %1028 = vmatpush1.bf16.msra.mxu0 0
        %1029 = vmatprep.subr.bf16.mxu0 0
        %1030 = vmatpush1.bf16.msra.mxu0 0
        %1031 = vmatprep.subr.bf16.mxu0 0
        %1032 = vmatpush1.bf16.msra.mxu0 0
        %1033 = vmatprep.subr.bf16.mxu0 0
        %1034 = vmatpush1.bf16.msra.mxu0 0
        %1035 = vmatprep.subr.bf16.mxu0 0
        %1036 = vmatpush1.bf16.msra.mxu0 0
        %1037 = vmatprep.subr.bf16.mxu0 0
        %1038 = vmatpush1.bf16.msra.mxu0 0
        %1039 = vmatprep.subr.bf16.mxu0 0
        %1040 = vmatpush1.bf16.msra.mxu0 0
        %1041 = vmatprep.subr.bf16.mxu0 0
        %1042 = vmatpush1.bf16.msra.mxu0 0
        %1043 = vmatprep.subr.bf16.mxu0 0
        %1044 = vmatpush1.bf16.msra.mxu0 0
        %1045 = vmatprep.subr.bf16.mxu0 0
        %1046 = vmatpush1.bf16.msra.mxu0 0
        %1047 = vmatprep.mubr.bf16.mxu0 0
        %1048 = vmatmul.mubr.bf16.gmra.mrb[0].mxu0 %v1010
        %v1049 = vpop.f32.mrb[0].mxu0
        %v1050 = vadd.f32 0.0, %v1049
        %v1051 = vpop.f32.mrb[0].mxu0
        %v1052 = vpop.f32.mrb[0].mxu0
        %v1053 = vpop.f32.mrb[0].mxu0
        %1054 = vdwg.mxu0
        %1055 = vrot.lane.b32.xlu0 %v493, 48
        %v1056 = vpop.permute.xlu0 %1055
        %v1058 = vsel %vm446, %v1006, 0
        %v1061 = vsel %vm571, %v1056, 0
        %1063 = vmatprep.subr.bf16.mxu0 0
        %1064 = vmatpush1.bf16.msra.mxu0 %v1061
        %1065 = vmatprep.subr.bf16.mxu0 0
        %1066 = vmatpush1.bf16.msra.mxu0 0
        %1067 = vmatprep.subr.bf16.mxu0 0
        %1068 = vmatpush1.bf16.msra.mxu0 0
        %1069 = vmatprep.subr.bf16.mxu0 0
        %1070 = vmatpush1.bf16.msra.mxu0 0
        %1071 = vmatprep.subr.bf16.mxu0 0
        %1072 = vmatpush1.bf16.msra.mxu0 0
        %1073 = vmatprep.subr.bf16.mxu0 0
        %1074 = vmatpush1.bf16.msra.mxu0 0
        %1075 = vmatprep.subr.bf16.mxu0 0
        %1076 = vmatpush1.bf16.msra.mxu0 0
        %1077 = vmatprep.subr.bf16.mxu0 0
        %1078 = vmatpush1.bf16.msra.mxu0 0
        %1079 = vmatprep.subr.bf16.mxu0 0
        %1080 = vmatpush1.bf16.msra.mxu0 0
        %1081 = vmatprep.subr.bf16.mxu0 0
        %1082 = vmatpush1.bf16.msra.mxu0 0
        %1083 = vmatprep.subr.bf16.mxu0 0
        %1084 = vmatpush1.bf16.msra.mxu0 0
        %1085 = vmatprep.subr.bf16.mxu0 0
        %1086 = vmatpush1.bf16.msra.mxu0 0
        %1087 = vmatprep.subr.bf16.mxu0 0
        %1088 = vmatpush1.bf16.msra.mxu0 0
        %1089 = vmatprep.subr.bf16.mxu0 0
        %1090 = vmatpush1.bf16.msra.mxu0 0
        %1091 = vmatprep.subr.bf16.mxu0 0
        %1092 = vmatpush1.bf16.msra.mxu0 0
        %1093 = vmatprep.subr.bf16.mxu0 0
        %1094 = vmatpush1.bf16.msra.mxu0 0
        %1095 = vmatprep.mubr.bf16.mxu0 0
        %1096 = vmatmul.mubr.bf16.gmra.mrb[0].mxu0 %v1058
        %v1097 = vpop.f32.mrb[0].mxu0
        %v1098 = vadd.f32 0.0, %v1097
        %v1099 = vpop.f32.mrb[0].mxu0
        %v1100 = vpop.f32.mrb[0].mxu0
        %v1101 = vpop.f32.mrb[0].mxu0
        %1102 = vdwg.mxu0
        %1103 = vrot.lane.b32.xlu0 %v437, 104
        %v1104 = vpop.permute.xlu0 %1103
        %1105 = vrot.lane.b32.xlu0 %v443, 72
        %v1106 = vpop.permute.xlu0 %1105
        %v1108 = vsel %vm446, %v1104, 0
        %v1111 = vsel %vm446, %v1106, 0
        %1113 = vmatprep.subr.bf16.mxu0 0
        %1114 = vmatpush1.bf16.xpose.msra.mxu0 %v1111
        %1115 = vmatprep.subr.bf16.mxu0 0
        %1116 = vmatpush1.bf16.xpose.msra.mxu0 0
        %1117 = vmatprep.subr.bf16.mxu0 0
        %1118 = vmatpush1.bf16.xpose.msra.mxu0 0
        %1119 = vmatprep.subr.bf16.mxu0 0
        %1120 = vmatpush1.bf16.xpose.msra.mxu0 0
        %1121 = vmatprep.subr.bf16.mxu0 0
        %1122 = vmatpush1.bf16.xpose.msra.mxu0 0
        %1123 = vmatprep.subr.bf16.mxu0 0
        %1124 = vmatpush1.bf16.xpose.msra.mxu0 0
        %1125 = vmatprep.subr.bf16.mxu0 0
        %1126 = vmatpush1.bf16.xpose.msra.mxu0 0
        %1127 = vmatprep.subr.bf16.mxu0 0
        %1128 = vmatpush1.bf16.xpose.msra.mxu0 0
        %1129 = vmatprep.subr.bf16.mxu0 0
        %1130 = vmatpush1.bf16.xpose.msra.mxu0 0
        %1131 = vmatprep.subr.bf16.mxu0 0
        %1132 = vmatpush1.bf16.xpose.msra.mxu0 0
        %1133 = vmatprep.subr.bf16.mxu0 0
        %1134 = vmatpush1.bf16.xpose.msra.mxu0 0
        %1135 = vmatprep.subr.bf16.mxu0 0
        %1136 = vmatpush1.bf16.xpose.msra.mxu0 0
        %1137 = vmatprep.subr.bf16.mxu0 0
        %1138 = vmatpush1.bf16.xpose.msra.mxu0 0
        %1139 = vmatprep.subr.bf16.mxu0 0
        %1140 = vmatpush1.bf16.xpose.msra.mxu0 0
        %1141 = vmatprep.subr.bf16.mxu0 0
        %1142 = vmatpush1.bf16.xpose.msra.mxu0 0
        %1143 = vmatprep.subr.bf16.mxu0 0
        %1144 = vmatpush1.bf16.xpose.msra.mxu0 0
        %1145 = vmatprep.mubr.bf16.mxu0 0
        %1146 = vmatmul.mubr.bf16.gmra.mrb[0].mxu0 %v1108
        %v1147 = vpop.f32.mrb[0].mxu0
        %v1148 = vadd.f32 0.0, %v1147
        %v1149 = vpop.f32.mrb[0].mxu0
        %v1150 = vpop.f32.mrb[0].mxu0
        %v1151 = vpop.f32.mrb[0].mxu0
        %1152 = vdwg.mxu0
        %1153 = vrot.lane.b32.xlu0 %v438, 104
        %v1154 = vpop.permute.xlu0 %1153
        %1155 = vrot.lane.b32.xlu0 %v493, 72
        %v1156 = vpop.permute.xlu0 %1155
        %v1158 = vsel %vm446, %v1154, 0
        %v1161 = vsel %vm446, %v1156, 0
        %1163 = vmatprep.subr.bf16.mxu0 0
        %1164 = vmatpush1.bf16.xpose.msra.mxu0 %v1161
        %1165 = vmatprep.subr.bf16.mxu0 0
        %1166 = vmatpush1.bf16.xpose.msra.mxu0 0
        %1167 = vmatprep.subr.bf16.mxu0 0
        %1168 = vmatpush1.bf16.xpose.msra.mxu0 0
        %1169 = vmatprep.subr.bf16.mxu0 0
        %1170 = vmatpush1.bf16.xpose.msra.mxu0 0
        %1171 = vmatprep.subr.bf16.mxu0 0
        %1172 = vmatpush1.bf16.xpose.msra.mxu0 0
        %1173 = vmatprep.subr.bf16.mxu0 0
        %1174 = vmatpush1.bf16.xpose.msra.mxu0 0
        %1175 = vmatprep.subr.bf16.mxu0 0
        %1176 = vmatpush1.bf16.xpose.msra.mxu0 0
        %1177 = vmatprep.subr.bf16.mxu0 0
        %1178 = vmatpush1.bf16.xpose.msra.mxu0 0
        %1179 = vmatprep.subr.bf16.mxu0 0
        %1180 = vmatpush1.bf16.xpose.msra.mxu0 0
        %1181 = vmatprep.subr.bf16.mxu0 0
        %1182 = vmatpush1.bf16.xpose.msra.mxu0 0
        %1183 = vmatprep.subr.bf16.mxu0 0
        %1184 = vmatpush1.bf16.xpose.msra.mxu0 0
        %1185 = vmatprep.subr.bf16.mxu0 0
        %1186 = vmatpush1.bf16.xpose.msra.mxu0 0
        %1187 = vmatprep.subr.bf16.mxu0 0
        %1188 = vmatpush1.bf16.xpose.msra.mxu0 0
        %1189 = vmatprep.subr.bf16.mxu0 0
        %1190 = vmatpush1.bf16.xpose.msra.mxu0 0
        %1191 = vmatprep.subr.bf16.mxu0 0
        %1192 = vmatpush1.bf16.xpose.msra.mxu0 0
        %1193 = vmatprep.subr.bf16.mxu0 0
        %1194 = vmatpush1.bf16.xpose.msra.mxu0 0
        %1195 = vmatprep.mubr.bf16.mxu0 0
        %1196 = vmatmul.mubr.bf16.gmra.mrb[0].mxu0 %v1158
        %v1197 = vpop.f32.mrb[0].mxu0
        %v1198 = vadd.f32 0.0, %v1197
        %v1199 = vpop.f32.mrb[0].mxu0
        %v1200 = vpop.f32.mrb[0].mxu0
        %v1201 = vpop.f32.mrb[0].mxu0
        %1202 = vdwg.mxu0
        %v1203 = vsel %vm446, %v1148, -inf
        %1204 = vmax.xlane.f32.xlu0 %v1203
        %v1205 = vpop.xlane.xlu0 %1204
        %v1206 = vsel %vm446, %v1198, -inf
        %1207 = vmax.xlane.f32.xlu0 %v1206
        %v1208 = vpop.xlane.xlu0 %1207
        %v1209 = vsub.f32 %v1148, %v1205
        %v1210 = vsub.f32 %v1198, %v1208
        %v1211 = vmul.f32 %v1209, 1.442695
        %v1212 = vpow.pop %v1211
        %v1213 = vmul.f32 %v1210, 1.442695
        %v1214 = vpow.pop %v1213
        %v1215 = vsel %vm446, %v1212, 0.0
        %1216 = vadd.xlane.f32.xlu0 %v1215
        %v1217 = vpop.xlane.xlu0 %1216
        %v1218 = vsel %vm446, %v1214, 0.0
        %1219 = vadd.xlane.f32.xlu0 %v1218
        %v1220 = vpop.xlane.xlu0 %1219
        %v1221 = vrcp.pop %v1217
        %v1222 = vrcp.pop %v1220
        %v1223 = vmul.f32 %v1212, %v1221
        %v1224 = vmul.f32 %v1214, %v1222
        %v1225 = vpack.c.bf16 %v1223, %v1223
        %v1226 = vpack.c.bf16 %v1224, %v1224
        %1227 = vrot.lane.b32.xlu0 %v443, 40
        %v1228 = vpop.permute.xlu0 %1227
        %v1230 = vsel %vm446, %v1225, 0
        %v1233 = vsel %vm571, %v1228, 0
        %1235 = vmatprep.subr.bf16.mxu0 0
        %1236 = vmatpush1.bf16.msra.mxu0 %v1233
        %1237 = vmatprep.subr.bf16.mxu0 0
        %1238 = vmatpush1.bf16.msra.mxu0 0
        %1239 = vmatprep.subr.bf16.mxu0 0
        %1240 = vmatpush1.bf16.msra.mxu0 0
        %1241 = vmatprep.subr.bf16.mxu0 0
        %1242 = vmatpush1.bf16.msra.mxu0 0
        %1243 = vmatprep.subr.bf16.mxu0 0
        %1244 = vmatpush1.bf16.msra.mxu0 0
        %1245 = vmatprep.subr.bf16.mxu0 0
        %1246 = vmatpush1.bf16.msra.mxu0 0
        %1247 = vmatprep.subr.bf16.mxu0 0
        %1248 = vmatpush1.bf16.msra.mxu0 0
        %1249 = vmatprep.subr.bf16.mxu0 0
        %1250 = vmatpush1.bf16.msra.mxu0 0
        %1251 = vmatprep.subr.bf16.mxu0 0
        %1252 = vmatpush1.bf16.msra.mxu0 0
        %1253 = vmatprep.subr.bf16.mxu0 0
        %1254 = vmatpush1.bf16.msra.mxu0 0
        %1255 = vmatprep.subr.bf16.mxu0 0
        %1256 = vmatpush1.bf16.msra.mxu0 0
        %1257 = vmatprep.subr.bf16.mxu0 0
        %1258 = vmatpush1.bf16.msra.mxu0 0
        %1259 = vmatprep.subr.bf16.mxu0 0
        %1260 = vmatpush1.bf16.msra.mxu0 0
        %1261 = vmatprep.subr.bf16.mxu0 0
        %1262 = vmatpush1.bf16.msra.mxu0 0
        %1263 = vmatprep.subr.bf16.mxu0 0
        %1264 = vmatpush1.bf16.msra.mxu0 0
        %1265 = vmatprep.subr.bf16.mxu0 0
        %1266 = vmatpush1.bf16.msra.mxu0 0
        %1267 = vmatprep.mubr.bf16.mxu0 0
        %1268 = vmatmul.mubr.bf16.gmra.mrb[0].mxu0 %v1230
        %v1269 = vpop.f32.mrb[0].mxu0
        %v1270 = vadd.f32 0.0, %v1269
        %v1271 = vpop.f32.mrb[0].mxu0
        %v1272 = vpop.f32.mrb[0].mxu0
        %v1273 = vpop.f32.mrb[0].mxu0
        %1274 = vdwg.mxu0
        %1275 = vrot.lane.b32.xlu0 %v493, 40
        %v1276 = vpop.permute.xlu0 %1275
        %v1278 = vsel %vm446, %v1226, 0
        %v1281 = vsel %vm571, %v1276, 0
        %1283 = vmatprep.subr.bf16.mxu0 0
        %1284 = vmatpush1.bf16.msra.mxu0 %v1281
        %1285 = vmatprep.subr.bf16.mxu0 0
        %1286 = vmatpush1.bf16.msra.mxu0 0
        %1287 = vmatprep.subr.bf16.mxu0 0
        %1288 = vmatpush1.bf16.msra.mxu0 0
        %1289 = vmatprep.subr.bf16.mxu0 0
        %1290 = vmatpush1.bf16.msra.mxu0 0
        %1291 = vmatprep.subr.bf16.mxu0 0
        %1292 = vmatpush1.bf16.msra.mxu0 0
        %1293 = vmatprep.subr.bf16.mxu0 0
        %1294 = vmatpush1.bf16.msra.mxu0 0
        %1295 = vmatprep.subr.bf16.mxu0 0
        %1296 = vmatpush1.bf16.msra.mxu0 0
        %1297 = vmatprep.subr.bf16.mxu0 0
        %1298 = vmatpush1.bf16.msra.mxu0 0
        %1299 = vmatprep.subr.bf16.mxu0 0
        %1300 = vmatpush1.bf16.msra.mxu0 0
        %1301 = vmatprep.subr.bf16.mxu0 0
        %1302 = vmatpush1.bf16.msra.mxu0 0
        %1303 = vmatprep.subr.bf16.mxu0 0
        %1304 = vmatpush1.bf16.msra.mxu0 0
        %1305 = vmatprep.subr.bf16.mxu0 0
        %1306 = vmatpush1.bf16.msra.mxu0 0
        %1307 = vmatprep.subr.bf16.mxu0 0
        %1308 = vmatpush1.bf16.msra.mxu0 0
        %1309 = vmatprep.subr.bf16.mxu0 0
        %1310 = vmatpush1.bf16.msra.mxu0 0
        %1311 = vmatprep.subr.bf16.mxu0 0
        %1312 = vmatpush1.bf16.msra.mxu0 0
        %1313 = vmatprep.subr.bf16.mxu0 0
        %1314 = vmatpush1.bf16.msra.mxu0 0
        %1315 = vmatprep.mubr.bf16.mxu0 0
        %1316 = vmatmul.mubr.bf16.gmra.mrb[0].mxu0 %v1278
        %v1317 = vpop.f32.mrb[0].mxu0
        %v1318 = vadd.f32 0.0, %v1317
        %v1319 = vpop.f32.mrb[0].mxu0
        %v1320 = vpop.f32.mrb[0].mxu0
        %v1321 = vpop.f32.mrb[0].mxu0
        %1322 = vdwg.mxu0
        %1325 = vrot.lane.b32.xlu0 %v830, 8
        %v1326 = vpop.permute.xlu0 %1325
        %1327 = vrot.lane.b32.xlu0 %v878, 8
        %v1328 = vpop.permute.xlu0 %1327
        %1333 = vrot.lane.b32.xlu0 %v1050, 16
        %v1334 = vpop.permute.xlu0 %1333
        %1335 = vrot.lane.b32.xlu0 %v1098, 16
        %v1336 = vpop.permute.xlu0 %1335
        %1341 = vrot.lane.b32.xlu0 %v1270, 24
        %v1342 = vpop.permute.xlu0 %1341
        %1343 = vrot.lane.b32.xlu0 %v1318, 24
        %v1344 = vpop.permute.xlu0 %1343
        %v1347 = vsel %vm446, %v610, %v1326
        %v1348 = vsel %vm446, %v658, %v1328
        %vm1349 = vcmask 130048
        %v1350 = vsel %vm1349, %v1347, %v1334
        %v1351 = vsel %vm1349, %v1348, %v1336
        %vm1352 = vcmask 195584
        %v1353 = vsel %vm1352, %v1350, %v1342
        %v1354 = vsel %vm1352, %v1351, %v1344
        %v1355 = vpack.c.bf16 %v1354, %v1353
        %v1356 = vld [vmem:[%s341] sm:$0xf]
        %v1357 = vld [vmem:[%s341 + $0x4] sm:$0xf]
        %v1358 = vld [vmem:[%s341 + $0x8] sm:$0xf]
        %v1359 = vld [vmem:[%s341 + $0xc] sm:$0xf]
        %v1364 = vunpack.c.l.b16 %v1356
        %v1365 = vunpack.c.l.b16 %v1357
        %v1366 = vunpack.c.l.b16 %v1358
        %v1367 = vunpack.c.l.b16 %v1359
        %v1368 = vpack.c.b16 %v1365, %v1364
        %v1369 = vpack.c.b16 %v1367, %v1366
        %v1373 = vsel %vm386, %v1355, 0
        %1375 = vmatprep.subr.bf16.mxu0 0
        %1376 = vmatpush1.bf16.msra.mxu0 %v1368
        %1377 = vmatprep.subr.bf16.mxu0 0
        %1378 = vmatpush1.bf16.msra.mxu0 %v1369
        %1379 = vmatprep.subr.bf16.mxu0 0
        %1380 = vmatpush1.bf16.msra.mxu0 0
        %1381 = vmatprep.subr.bf16.mxu0 0
        %1382 = vmatpush1.bf16.msra.mxu0 0
        %1383 = vmatprep.subr.bf16.mxu0 0
        %1384 = vmatpush1.bf16.msra.mxu0 0
        %1385 = vmatprep.subr.bf16.mxu0 0
        %1386 = vmatpush1.bf16.msra.mxu0 0
        %1387 = vmatprep.subr.bf16.mxu0 0
        %1388 = vmatpush1.bf16.msra.mxu0 0
        %1389 = vmatprep.subr.bf16.mxu0 0
        %1390 = vmatpush1.bf16.msra.mxu0 0
        %1391 = vmatprep.subr.bf16.mxu0 0
        %1392 = vmatpush1.bf16.msra.mxu0 0
        %1393 = vmatprep.subr.bf16.mxu0 0
        %1394 = vmatpush1.bf16.msra.mxu0 0
        %1395 = vmatprep.subr.bf16.mxu0 0
        %1396 = vmatpush1.bf16.msra.mxu0 0
        %1397 = vmatprep.subr.bf16.mxu0 0
        %1398 = vmatpush1.bf16.msra.mxu0 0
        %1399 = vmatprep.subr.bf16.mxu0 0
        %1400 = vmatpush1.bf16.msra.mxu0 0
        %1401 = vmatprep.subr.bf16.mxu0 0
        %1402 = vmatpush1.bf16.msra.mxu0 0
        %1403 = vmatprep.subr.bf16.mxu0 0
        %1404 = vmatpush1.bf16.msra.mxu0 0
        %1405 = vmatprep.subr.bf16.mxu0 0
        %1406 = vmatpush1.bf16.msra.mxu0 0
        %1407 = vmatprep.mubr.bf16.mxu0 0
        %1408 = vmatmul.mubr.bf16.gmra.mrb[0].mxu0 %v1373
        %v1409 = vpop.f32.mrb[0].mxu0
        %v1410 = vadd.f32 0.0, %v1409
        %v1411 = vpop.f32.mrb[0].mxu0
        %v1412 = vpop.f32.mrb[0].mxu0
        %v1413 = vadd.f32 0.0, %v1412
        %v1414 = vpop.f32.mrb[0].mxu0
        %1415 = vdwg.mxu0
        %v1416 = vld [vmem:[%s345] sm:$0xf]
        %v1417 = vadd.f32 %v367, %v1410
        %v1418 = vadd.f32 %v368, %v1413
        %v1419 = vsel %vm386, %v1417, 0.0
        %1420 = vadd.xlane.f32.xlu0 %v1419
        %v1421 = vpop.xlane.xlu0 %1420
        %v1422 = vsel %vm386, %v1418, 0.0
        %1423 = vadd.xlane.f32.xlu0 %v1422
        %v1424 = vpop.xlane.xlu0 %1423
        %v1425 = vrcp.pop 32.0
        %v1426 = vmul.f32 %v1421, %v1425
        %v1427 = vmul.f32 %v1424, %v1425
        %v1428 = vsub.f32 %v1417, %v1426
        %v1429 = vsub.f32 %v1418, %v1427
        %v1430 = vmul.f32 %v1428, %v1428
        %v1431 = vmul.f32 %v1429, %v1429
        %v1432 = vsel %vm386, %v1430, 0.0
        %1433 = vadd.xlane.f32.xlu0 %v1432
        %v1434 = vpop.xlane.xlu0 %1433
        %v1435 = vsel %vm386, %v1431, 0.0
        %1436 = vadd.xlane.f32.xlu0 %v1435
        %v1437 = vpop.xlane.xlu0 %1436
        %v1438 = vmul.f32 %v1434, %v1425
        %v1439 = vmul.f32 %v1437, %v1425
        %v1440 = vadd.f32 %v1438, 1e-05
        %v1441 = vadd.f32 %v1439, 1e-05
        %v1442 = vrsqrt.pop %v1440
        %v1443 = vrsqrt.pop %v1441
        %v1444 = vmul.f32 %v1428, %v1442
        %v1445 = vmul.f32 %v1429, %v1443
        %v1446 = vlaneseq
        %v1447 = vshrl.u32 %v1446, 7
        %v1448 = vsub.s32 0, %v1447
        %v1449 = vrot.slane %v1416, %v1448
        %v1450 = vmul.f32 %v1444, %v1449
        %v1451 = vmul.f32 %v1445, %v1449
        %v1452 = vlaneseq
        %v1453 = vshrl.u32 %v1452, 7
        %v1454 = vsub.s32 1, %v1453
        %v1455 = vrot.slane %v1416, %v1454
        %v1456 = vadd.f32 %v1450, %v1455
        %v1457 = vadd.f32 %v1451, %v1455
        %v1458 = vpack.c.bf16 %v1457, %v1456
        %v1459 = vld [vmem:[%s350] sm:$0xf]
        %v1460 = vld [vmem:[%s350 + $0x4] sm:$0xf]
        %v1461 = vld [vmem:[%s350 + $0x8] sm:$0xf]
        %v1462 = vld [vmem:[%s350 + $0xc] sm:$0xf]
        %v1467 = vunpack.c.l.b16 %v1459
        %v1468 = vunpack.c.l.b16 %v1460
        %v1469 = vunpack.c.l.b16 %v1461
        %v1470 = vunpack.c.l.b16 %v1462
        %v1471 = vpack.c.b16 %v1468, %v1467
        %v1472 = vpack.c.b16 %v1470, %v1469
        %v1476 = vsel %vm386, %v1458, 0
        %1478 = vmatprep.subr.bf16.mxu0 0
        %1479 = vmatpush1.bf16.msra.mxu0 %v1471
        %1480 = vmatprep.subr.bf16.mxu0 0
        %1481 = vmatpush1.bf16.msra.mxu0 %v1472
        %1482 = vmatprep.subr.bf16.mxu0 0
        %1483 = vmatpush1.bf16.msra.mxu0 0
        %1484 = vmatprep.subr.bf16.mxu0 0
        %1485 = vmatpush1.bf16.msra.mxu0 0
        %1486 = vmatprep.subr.bf16.mxu0 0
        %1487 = vmatpush1.bf16.msra.mxu0 0
        %1488 = vmatprep.subr.bf16.mxu0 0
        %1489 = vmatpush1.bf16.msra.mxu0 0
        %1490 = vmatprep.subr.bf16.mxu0 0
        %1491 = vmatpush1.bf16.msra.mxu0 0
        %1492 = vmatprep.subr.bf16.mxu0 0
        %1493 = vmatpush1.bf16.msra.mxu0 0
        %1494 = vmatprep.subr.bf16.mxu0 0
        %1495 = vmatpush1.bf16.msra.mxu0 0
        %1496 = vmatprep.subr.bf16.mxu0 0
        %1497 = vmatpush1.bf16.msra.mxu0 0
        %1498 = vmatprep.subr.bf16.mxu0 0
        %1499 = vmatpush1.bf16.msra.mxu0 0
        %1500 = vmatprep.subr.bf16.mxu0 0
        %1501 = vmatpush1.bf16.msra.mxu0 0
        %1502 = vmatprep.subr.bf16.mxu0 0
        %1503 = vmatpush1.bf16.msra.mxu0 0
        %1504 = vmatprep.subr.bf16.mxu0 0
        %1505 = vmatpush1.bf16.msra.mxu0 0
        %1506 = vmatprep.subr.bf16.mxu0 0
        %1507 = vmatpush1.bf16.msra.mxu0 0
        %1508 = vmatprep.subr.bf16.mxu0 0
        %1509 = vmatpush1.bf16.msra.mxu0 0
        %1510 = vmatprep.mubr.bf16.mxu0 0
        %1511 = vmatmul.mubr.bf16.gmra.mrb[0].mxu0 %v1476
        %v1512 = vpop.f32.mrb[0].mxu0
        %v1513 = vadd.f32 0.0, %v1512
        %v1514 = vpop.f32.mrb[0].mxu0
        %v1515 = vpop.f32.mrb[0].mxu0
        %v1516 = vadd.f32 0.0, %v1515
        %v1517 = vpop.f32.mrb[0].mxu0
        %1518 = vdwg.mxu0
        %v1519 = vmax.f32 %v1513, 0.0
        %v1520 = vmax.f32 %v1516, 0.0
        %v1521 = vpack.c.bf16 %v1520, %v1519
        %v1522 = vld [vmem:[%s355] sm:$0xf]
        %v1523 = vld [vmem:[%s355 + $0x4] sm:$0xf]
        %v1524 = vld [vmem:[%s355 + $0x8] sm:$0xf]
        %v1525 = vld [vmem:[%s355 + $0xc] sm:$0xf]
        %v1526 = vld [vmem:[%s355 + $0x10] sm:$0xf]
        %v1527 = vld [vmem:[%s355 + $0x14] sm:$0xf]
        %v1528 = vld [vmem:[%s355 + $0x18] sm:$0xf]
        %v1529 = vld [vmem:[%s355 + $0x1c] sm:$0xf]
        %v1530 = vld [vmem:[%s355 + $0x20] sm:$0xf]
        %v1531 = vld [vmem:[%s355 + $0x24] sm:$0xf]
        %v1532 = vld [vmem:[%s355 + $0x28] sm:$0xf]
        %v1533 = vld [vmem:[%s355 + $0x2c] sm:$0xf]
        %v1534 = vld [vmem:[%s355 + $0x30] sm:$0xf]
        %v1535 = vld [vmem:[%s355 + $0x34] sm:$0xf]
        %v1536 = vld [vmem:[%s355 + $0x38] sm:$0xf]
        %v1537 = vld [vmem:[%s355 + $0x3c] sm:$0xf]
        %v1554 = vunpack.c.l.b16 %v1522
        %v1555 = vunpack.c.l.b16 %v1523
        %v1556 = vunpack.c.l.b16 %v1524
        %v1557 = vunpack.c.l.b16 %v1525
        %v1558 = vunpack.c.l.b16 %v1526
        %v1559 = vunpack.c.l.b16 %v1527
        %v1560 = vunpack.c.l.b16 %v1528
        %v1561 = vunpack.c.l.b16 %v1529
        %v1562 = vunpack.c.l.b16 %v1530
        %v1563 = vunpack.c.l.b16 %v1531
        %v1564 = vunpack.c.l.b16 %v1532
        %v1565 = vunpack.c.l.b16 %v1533
        %v1566 = vunpack.c.l.b16 %v1534
        %v1567 = vunpack.c.l.b16 %v1535
        %v1568 = vunpack.c.l.b16 %v1536
        %v1569 = vunpack.c.l.b16 %v1537
        %v1570 = vpack.c.b16 %v1555, %v1554
        %v1571 = vpack.c.b16 %v1557, %v1556
        %v1572 = vpack.c.b16 %v1559, %v1558
        %v1573 = vpack.c.b16 %v1561, %v1560
        %v1574 = vpack.c.b16 %v1563, %v1562
        %v1575 = vpack.c.b16 %v1565, %v1564
        %v1576 = vpack.c.b16 %v1567, %v1566
        %v1577 = vpack.c.b16 %v1569, %v1568
        %1586 = vmatprep.subr.bf16.mxu0 0
        %1587 = vmatpush1.bf16.msra.mxu0 %v1570
        %1588 = vmatprep.subr.bf16.mxu0 0
        %1589 = vmatpush1.bf16.msra.mxu0 %v1571
        %1590 = vmatprep.subr.bf16.mxu0 0
        %1591 = vmatpush1.bf16.msra.mxu0 %v1572
        %1592 = vmatprep.subr.bf16.mxu0 0
        %1593 = vmatpush1.bf16.msra.mxu0 %v1573
        %1594 = vmatprep.subr.bf16.mxu0 0
        %1595 = vmatpush1.bf16.msra.mxu0 %v1574
        %1596 = vmatprep.subr.bf16.mxu0 0
        %1597 = vmatpush1.bf16.msra.mxu0 %v1575
        %1598 = vmatprep.subr.bf16.mxu0 0
        %1599 = vmatpush1.bf16.msra.mxu0 %v1576
        %1600 = vmatprep.subr.bf16.mxu0 0
        %1601 = vmatpush1.bf16.msra.mxu0 %v1577
        %1602 = vmatprep.subr.bf16.mxu0 0
        %1603 = vmatpush1.bf16.msra.mxu0 0
        %1604 = vmatprep.subr.bf16.mxu0 0
        %1605 = vmatpush1.bf16.msra.mxu0 0
        %1606 = vmatprep.subr.bf16.mxu0 0
        %1607 = vmatpush1.bf16.msra.mxu0 0
        %1608 = vmatprep.subr.bf16.mxu0 0
        %1609 = vmatpush1.bf16.msra.mxu0 0
        %1610 = vmatprep.subr.bf16.mxu0 0
        %1611 = vmatpush1.bf16.msra.mxu0 0
        %1612 = vmatprep.subr.bf16.mxu0 0
        %1613 = vmatpush1.bf16.msra.mxu0 0
        %1614 = vmatprep.subr.bf16.mxu0 0
        %1615 = vmatpush1.bf16.msra.mxu0 0
        %1616 = vmatprep.subr.bf16.mxu0 0
        %1617 = vmatpush1.bf16.msra.mxu0 0
        %1618 = vmatprep.mubr.bf16.mxu0 0
        %1619 = vmatmul.mubr.bf16.gmra.mrb[0].mxu0 %v1521
        %v1620 = vpop.f32.mrb[0].mxu0
        %v1621 = vadd.f32 0.0, %v1620
        %v1622 = vpop.f32.mrb[0].mxu0
        %v1623 = vpop.f32.mrb[0].mxu0
        %v1624 = vadd.f32 0.0, %v1623
        %v1625 = vpop.f32.mrb[0].mxu0
        %1626 = vdwg.mxu0
        %v1627 = vadd.f32 %v1456, %v1621
        %v1628 = vadd.f32 %v1457, %v1624
        %v1629 = vsel %vm386, %v1627, 0.0
        %1630 = vadd.xlane.f32.xlu0 %v1629
        %v1631 = vpop.xlane.xlu0 %1630
        %v1632 = vsel %vm386, %v1628, 0.0
        %1633 = vadd.xlane.f32.xlu0 %v1632
        %v1634 = vpop.xlane.xlu0 %1633
        %v1635 = vmul.f32 %v1631, %v1425
        %v1636 = vmul.f32 %v1634, %v1425
        %v1637 = vsub.f32 %v1627, %v1635
        %v1638 = vsub.f32 %v1628, %v1636
        %v1639 = vmul.f32 %v1637, %v1637
        %v1640 = vmul.f32 %v1638, %v1638
        %v1641 = vsel %vm386, %v1639, 0.0
        %1642 = vadd.xlane.f32.xlu0 %v1641
        %v1643 = vpop.xlane.xlu0 %1642
        %v1644 = vsel %vm386, %v1640, 0.0
        %1645 = vadd.xlane.f32.xlu0 %v1644
        %v1646 = vpop.xlane.xlu0 %1645
        %v1647 = vmul.f32 %v1643, %v1425
        %v1648 = vmul.f32 %v1646, %v1425
        %v1649 = vadd.f32 %v1647, 1e-05
        %v1650 = vadd.f32 %v1648, 1e-05
        %v1651 = vrsqrt.pop %v1649
        %v1652 = vrsqrt.pop %v1650
        %v1653 = vmul.f32 %v1637, %v1651
        %v1654 = vmul.f32 %v1638, %v1652
        %v1655 = vlaneseq
        %v1656 = vshrl.u32 %v1655, 7
        %v1657 = vsub.s32 2, %v1656
        %v1658 = vrot.slane %v1416, %v1657
        %v1659 = vmul.f32 %v1653, %v1658
        %v1660 = vmul.f32 %v1654, %v1658
        %v1661 = vlaneseq
        %v1662 = vshrl.u32 %v1661, 7
        %v1663 = vsub.s32 3, %v1662
        %v1664 = vrot.slane %v1416, %v1663
        %v1665 = vadd.f32 %v1659, %v1664
        %v1666 = vadd.f32 %v1660, %v1664
        %1667 = vst.msk [vmem:[#allocation5] sm:$0xff] %vm386, %v1665
        %1668 = vst.msk [vmem:[#allocation5 + $0x8] sm:$0xff] %vm386, %v1666
        // Predicated region
        $region53: #{tpu_custom_call.1} parent=43 // pred_check
          %p1669 = pneg %p205
        $region54: #{tpu_custom_call.1} parent=43 // pred_check_branch
          %1671 = sbr.rel (%p1669) target = $region56
        $region55: #{tpu_custom_call.1} parent=43 // pred_region
          %s1672 = smul.u32 2, %s23
          %s1674 = ssub.s32 256, 256
          %1675 = vsyncadd [#allocation4], %s1674
          %s1676 = smul.addr %s1672, 128
          %s1677 = scalar_lea.hbm %s6, %s1676
          %s1678 = sshll.u32 [#allocation5], 4
          %s1679 = int_to_ptr.vmem [resolvable:$true] %s1678
          %1684 = dma.vmem_to_hbm [thread:$0]  %s1679, 256, %s1677, [#allocation4], 128, 128, 8
        $region56: #{tpu_custom_call.1} parent=43 // pred_fallthru
          _
        // Predicated region
        $region57: #{tpu_custom_call.1} parent=43 // pred_check
          %p1685 = pneg %p205
        $region58: #{tpu_custom_call.1} parent=43 // pred_check_branch
          %1687 = sbr.rel (%p1685) target = $region60
        $region59: #{tpu_custom_call.1} parent=43 // pred_region
          %1688 = dma.done [#allocation4], 256
        $region60: #{tpu_custom_call.1} parent=43 // pred_fallthru
          _
      $region44: #{tpu_custom_call.1} parent=5 // pred_fallthru
        _
      %p1689 = scmp.le.s32.totalorder 2, %s14
      // Predicated region
      $region61: #{tpu_custom_call.1} parent=5 // pred_check
        %p1690 = pneg %p1689
      $region62: #{tpu_custom_call.1} parent=5 // pred_check_branch
        %1692 = sbr.rel (%p1690) target = $region64
      $region63: #{tpu_custom_call.1} parent=5 // pred_region
        %s1693 = ssub.s32 %s14, 2
      $region64: #{tpu_custom_call.1} parent=5 // pred_fallthru
        _
    $region6: #{tpu_custom_call.1} parent=1 // loop_footer
      %s18 = sadd.s32 1, %s14
    $region7: #{tpu_custom_call.1} parent=1 // loop_footer_branch
      %13 = sbr.rel target = $region3
    $region8: #{tpu_custom_call.1} parent=1 // loop_exit
      _
    %1694 = vsyncpa [#allocation3], 1
    %s1695 = scalar_lea.sflag [#allocation3], 1
    %1696 = vsyncpa %s1695, 1
    %1697 = vsyncpa [#allocation4], 1
    %s1698 = scalar_lea.sflag [#allocation4], 1
    %1699 = vsyncpa %s1698, 1

</llo_original>
